<compile_context>
chip_gen: v7x
topology: tpu7x:2x2x1
jax: 0.10.0
libtpu: 0.0.40
codegen_flags: <defaults>
</compile_context>

<pallas_src>
import jax
import jax.numpy as jnp
from jax.experimental import pallas as pl
from jax.experimental.pallas import tpu as pltpu

_EPS = 1e-5


# ---------------- in-kernel math helpers (2-D, feature axis last) ------------

def _matmul2d(a_f32, w_bf16, b_f32):
    """(M, Din) f32 @ (Din, Dout) bf16 -> (M, Dout) f32, plus bias (1, Dout)."""
    y = jnp.dot(a_f32.astype(jnp.bfloat16), w_bf16,
                preferred_element_type=jnp.float32)
    return y + b_f32


def _batchnorm2d(y, gamma, beta):
    """Training-mode nn.BatchNorm1d: per-channel stats over rows, biased var.
    One-pass (sum + sum-of-squares); padded (all-zero) channels stay zero
    because their gamma/beta are zero.  (If the XLU row-reduction ever shows
    up on the critical path, these sums can be moved to the MXU as
    ones-vector matmuls.)"""
    inv_m = 1.0 / y.shape[0]
    s1 = jnp.sum(y, axis=0, keepdims=True)
    s2 = jnp.sum(y * y, axis=0, keepdims=True)
    mean = s1 * inv_m
    var = jnp.maximum(s2 * inv_m - mean * mean, 0.0)
    return (y - mean) * jax.lax.rsqrt(var + _EPS) * gamma + beta


def _layernorm2d(y, gamma, beta, inv_d):
    """LayerNorm over the feature axis.  `inv_d` = 1 / (real feature count);
    padded channels are zero so they do not perturb the real-channel stats and
    come out as exactly zero again (gamma/beta zero there)."""
    s1 = jnp.sum(y, axis=-1, keepdims=True)
    s2 = jnp.sum(y * y, axis=-1, keepdims=True)
    mean = s1 * inv_d
    var = jnp.maximum(s2 * inv_d - mean * mean, 0.0)
    return (y - mean) * jax.lax.rsqrt(var + _EPS) * gamma + beta


def _softmax(a):
    # NOTE: approx reciprocal (EUP slot) -> ~1e-3 relative error vs exact divide.
    m = jnp.max(a, axis=-1, keepdims=True)
    e = jnp.exp(a - m)
    s = jnp.sum(e, axis=-1, keepdims=True)
    return e * pl.reciprocal(s, approx=True)


# ---------------- the per-layer kernel (grid iterates over layers) -----------

def _make_kernel(heads, d_real):
    inv_d = 1.0 / float(d_real)

    def kernel(mask_ref, h0_ref,
               w_qkvs_ref, b_qkvs_ref, g_qkvs_ref, be_qkvs_ref,
               g_ln_ref, b_ln_ref,
               w_ff_ref, b_ff_ref, g_ff_ref, be_ff_ref,
               h_ref):
        l = pl.program_id(0)
        N, S, Dp = h_ref.shape
        H = heads
        cp = Dp // H

        # ---- init the resident hidden state from the XLA-computed stem ------
        @pl.when(l == 0)
        def _():
            h_ref[...] = h0_ref[...]

        h3 = h_ref[...]                                  # (N, S, Dp) f32
        h2 = h3.reshape(N * S, Dp)

        # ---- fused Q|K|V|skip projection + fused 4Dp-wide BatchNorm ---------
        qkvs = _matmul2d(h2, w_qkvs_ref[...], b_qkvs_ref[...])      # (N*S, 4Dp)
        qkvs = _batchnorm2d(qkvs, g_qkvs_ref[...], be_qkvs_ref[...])

        q3 = qkvs[:, 0 * Dp:1 * Dp].reshape(N, S, Dp)    # 128-aligned slices
        k3 = qkvs[:, 1 * Dp:2 * Dp].reshape(N, S, Dp)
        v3 = qkvs[:, 2 * Dp:3 * Dp].reshape(N, S, Dp)
        xr = qkvs[:, 3 * Dp:4 * Dp]                      # skip branch, (N*S, Dp)

        mask = mask_ref[...]                             # (N, S, S)

        if H == 1:
            qh = q3.astype(jnp.bfloat16)
            kh = k3.astype(jnp.bfloat16)
            vh = v3.astype(jnp.bfloat16)
            scores = jnp.einsum('bqc,bkc->bqk', qh, kh,
                                preferred_element_type=jnp.float32)
            scores = scores * mask
            p = _softmax(scores).astype(jnp.bfloat16)
            attn = jnp.einsum('bqk,bkc->bqc', p, vh,
                              preferred_element_type=jnp.float32)   # (N,S,Dp)
        else:
            # heads-as-batch: aligned cp-wide lane slices stacked on the
            # LEADING axis -> one scores einsum + one PV einsum for all heads.
            def heads_to_batch(t3):                      # (N,S,Dp)->(H*N,S,cp)
                return jnp.concatenate(
                    [t3[:, :, h * cp:(h + 1) * cp] for h in range(H)], axis=0)

            qh = heads_to_batch(q3).astype(jnp.bfloat16)
            kh = heads_to_batch(k3).astype(jnp.bfloat16)
            vh = heads_to_batch(v3).astype(jnp.bfloat16)

            scores = jnp.einsum('bqc,bkc->bqk', qh, kh,
                                preferred_element_type=jnp.float32)  # (H*N,S,S)
            # apply the SAME (N,S,S) mask block to every head's score slice:
            # no H-times materialized mask copy, only leading-dim slices.
            scores = jnp.concatenate(
                [scores[h * N:(h + 1) * N] * mask for h in range(H)], axis=0)
            p = _softmax(scores).astype(jnp.bfloat16)
            oh = jnp.einsum('bqk,bkc->bqc', p, vh,
                            preferred_element_type=jnp.float32)      # (H*N,S,cp)
            # concat=True: heads back to the channel axis (per-head-padded layout)
            attn = jnp.concatenate(
                [oh[h * N:(h + 1) * N] for h in range(H)], axis=-1)  # (N,S,Dp)

        attn2 = attn.reshape(N * S, Dp)

        gln = g_ln_ref[...]
        bln = b_ln_ref[...]
        out2 = _layernorm2d(attn2 + h2, gln, bln, inv_d)
        ff = _matmul2d(out2, w_ff_ref[...], b_ff_ref[...])
        ff = _batchnorm2d(ff, g_ff_ref[...], be_ff_ref[...])
        out2 = _layernorm2d(out2 + ff, gln, bln, inv_d)  # shared LN params (as in ref)
        # root_weight=True, beta=False -> out = out + bn_skip(lin_skip(h))
        h_ref[...] = (out2 + xr).reshape(N, S, Dp)

    return kernel


# ---------------- padded, fused parameter layout -------------------------------

def _padded_width(D, heads):
    """Smallest Dp >= D that is a multiple of 128 and divisible by heads."""
    assert D % heads == 0, (D, heads)
    Dp = ((D + 127) // 128) * 128
    while Dp % heads:
        Dp += 128
    return Dp, Dp // heads


def _pad_ch(a, axis, heads, c, c_pad):
    """Scatter D=heads*c channels along `axis` into heads*c_pad positions
    (channel (h, j) -> h*c_pad + j), zero-filling the padding."""
    if c_pad == c:
        return a
    a = jnp.moveaxis(a, axis, -1)
    a = a.reshape(a.shape[:-1] + (heads, c))
    a = jnp.pad(a, [(0, 0)] * (a.ndim - 1) + [(0, c_pad - c)])
    a = a.reshape(a.shape[:-2] + (heads * c_pad,))
    return jnp.moveaxis(a, -1, axis)


def _fuse_params(params, heads, D, c_pad):
    c = D // heads
    bf = jnp.bfloat16

    def padc(a, axis):
        return _pad_ch(a, axis, heads, c, c_pad)

    def pad_w(w):                        # (nlayer, D, D) -> (nlayer, Dp, Dp)
        return padc(padc(w, 1), 2)

    def pad_v(v):                        # (nlayer, D)    -> (nlayer, 1, Dp)
        v = padc(v, 1)
        return v.reshape(v.shape[0], 1, v.shape[1])

    w_qkvs = jnp.concatenate([pad_w(params['wq']), pad_w(params['wk']),
                              pad_w(params['wv']), pad_w(params['wsk'])], axis=-1)
    b_qkvs = jnp.concatenate([pad_v(params['bq']), pad_v(params['bk']),
                              pad_v(params['bv']), pad_v(params['bsk'])], axis=-1)
    g_qkvs = jnp.concatenate([pad_v(params['gq']), pad_v(params['gk']),
                              pad_v(params['gv']), pad_v(params['gsk'])], axis=-1)
    be_qkvs = jnp.concatenate([pad_v(params['bqn']), pad_v(params['bkn']),
                               pad_v(params['bvn']), pad_v(params['bskn'])], axis=-1)

    return dict(
        # stem (XLA, f32) -- output channels scattered into the padded layout
        w_in=padc(params['w_in'], 1), b_in=padc(params['b_in'], 1),
        g_ibn=padc(params['g_ibn'], 1), be_ibn=padc(params['be_ibn'], 1),
        w_pe=padc(params['w_pe'], 1), b_pe=padc(params['b_pe'], 1),
        # head (XLA) -- input channels scattered (zero rows for padding)
        w_out=padc(params['w_out'], 0), b_out=params['b_out'],
        # per-layer streamed weights (kernel; matmul operands in bf16)
        w_qkvs=w_qkvs.astype(bf), b_qkvs=b_qkvs,
        g_qkvs=g_qkvs, be_qkvs=be_qkvs,
        g_ln=pad_v(params['gln']), b_ln=pad_v(params['bln']),
        w_ff=pad_w(params['wff']).astype(bf), b_ff=pad_v(params['bff']),
        g_ff=pad_v(params['gff']), be_ff=pad_v(params['bffn']),
    )


def _stem_xla(x, pe, fp):
    """h0 = in_bn(lin_in(x)) + lin_extra[0](pe), computed in XLA (f32, exact),
    directly in the per-head-padded channel layout."""
    N, S, _ = x.shape
    Dp = fp['w_in'].shape[-1]
    h = x.reshape(N * S, -1) @ fp['w_in'] + fp['b_in']
    mean = jnp.mean(h, axis=0, keepdims=True)
    var = jnp.mean((h - mean) ** 2, axis=0, keepdims=True)          # biased
    h = (h - mean) * jax.lax.rsqrt(var + _EPS) * fp['g_ibn'] + fp['be_ibn']
    h = h + pe.reshape(N * S, -1) @ fp['w_pe'] + fp['b_pe']
    return h.reshape(N, S, Dp)


def _pick_vmem_limit():
    """~48 MiB on 64-MiB-VMEM parts (v7x), ~96 MiB on 128-MiB parts (v5e/v6e)."""
    try:
        cap = getattr(pltpu.get_tpu_info(), "vmem_capacity_bytes", None)
        if cap:
            return int(min(cap * 3 // 4, 100 * 1024 * 1024))
    except Exception:
        pass
    return 48 * 1024 * 1024


# ---------------- wrapper ------------------------------------------------------

def detour_transformer_encoder(x, pad_mask, pe, params, heads):
    N, S, _ = x.shape
    D = params['w_in'].shape[-1]
    nlayer = params['wq'].shape[0]
    Dp, c_pad = _padded_width(D, heads)
    fp = _fuse_params(params, heads, D, c_pad)

    h0 = _stem_xla(x, pe, fp)                          # (N, S, Dp) f32

    def full(shape):
        n = len(shape)
        return pl.BlockSpec(shape, lambda l, n=n: (0,) * n)

    def per_layer(shape):                              # shape excludes nlayer dim
        n = len(shape)
        return pl.BlockSpec((None,) + shape, lambda l, n=n: (l,) + (0,) * n)

    in_specs = [
        full((N, S, S)),                               # pad_mask (resident)
        full((N, S, Dp)),                              # h0 (read only at l == 0)
        per_layer((Dp, 4 * Dp)), per_layer((1, 4 * Dp)),   # fused qkvs linear
        per_layer((1, 4 * Dp)), per_layer((1, 4 * Dp)),    # fused qkvs BN
        per_layer((1, Dp)), per_layer((1, Dp)),            # shared layer_norm
        per_layer((Dp, Dp)), per_layer((1, Dp)),           # lin_ff
        per_layer((1, Dp)), per_layer((1, Dp)),            # bn_ff
    ]

    h = pl.pallas_call(
        _make_kernel(heads, D),
        out_shape=jax.ShapeDtypeStruct((N, S, Dp), jnp.float32),
        grid_spec=pltpu.PrefetchScalarGridSpec(
            num_scalar_prefetch=0,
            grid=(nlayer,),
            in_specs=in_specs,
            out_specs=pl.BlockSpec((N, S, Dp), lambda l: (0, 0, 0)),
        ),
        input_output_aliases={1: 0},                   # donate h0's HBM to h
        compiler_params=pltpu.CompilerParams(
            dimension_semantics=("arbitrary",),        # layers carry h -> sequential
            vmem_limit_bytes=_pick_vmem_limit(),
        ),
    )(pad_mask, h0,
      fp['w_qkvs'], fp['b_qkvs'], fp['g_qkvs'], fp['be_qkvs'],
      fp['g_ln'], fp['b_ln'],
      fp['w_ff'], fp['b_ff'], fp['g_ff'], fp['be_ff'])

    # lin_out (D -> 1) stays in XLA: keeps the kernel's stores lane-dense.
    return h @ fp['w_out'] + fp['b_out']


# ---------------- pure-JAX reference (correctness guard) -----------------------

def _reference_forward(x, pad_mask, pe, params, heads):
    N, S, _ = x.shape
    D = params['w_in'].shape[-1]
    c = D // heads

    def bn(y, g, b):
        m = y.mean(0, keepdims=True)
        v = ((y - m) ** 2).mean(0, keepdims=True)
        return (y - m) * jax.lax.rsqrt(v + _EPS) * g + b

    def ln(y, g, b):
        m = y.mean(-1, keepdims=True)
        v = ((y - m) ** 2).mean(-1, keepdims=True)
        return (y - m) * jax.lax.rsqrt(v + _EPS) * g + b

    h = x.reshape(N * S, -1) @ params['w_in'] + params['b_in']
    h = bn(h, params['g_ibn'], params['be_ibn'])
    h = h + pe.reshape(N * S, -1) @ params['w_pe'] + params['b_pe']

    for l in range(params['wq'].shape[0]):
        def proj(w, b, g, be):
            return bn(h @ w[l] + b[l], g[l], be[l])
        q = proj(params['wq'], params['bq'], params['gq'], params['bqn'])
        k = proj(params['wk'], params['bk'], params['gk'], params['bkn'])
        v = proj(params['wv'], params['bv'], params['gv'], params['bvn'])
        xr = proj(params['wsk'], params['bsk'], params['gsk'], params['bskn'])

        q4 = q.reshape(N, S, heads, c).transpose(0, 2, 1, 3)
        k4 = k.reshape(N, S, heads, c).transpose(0, 2, 1, 3)
        v4 = v.reshape(N, S, heads, c).transpose(0, 2, 1, 3)
        scores = jnp.einsum('nhqc,nhkc->nhqk', q4, k4) * pad_mask[:, None]
        p = jax.nn.softmax(scores, axis=-1)
        attn = jnp.einsum('nhqk,nhkc->nhqc', p, v4).transpose(0, 2, 1, 3)
        attn = attn.reshape(N * S, D)

        out = ln(attn + h, params['gln'][l], params['bln'][l])
        ff = bn(out @ params['wff'][l] + params['bff'][l],
                params['gff'][l], params['bffn'][l])
        out = ln(out + ff, params['gln'][l], params['bln'][l])
        h = out + xr

    return h.reshape(N, S, D) @ params['w_out'] + params['b_out']


# ---------------- deterministic parameter init (PyTorch-shaped) ---------------

def init_params(key, in_channels, out_channels, pedim, nlayer):
    D = out_channels
    keys = iter(jax.random.split(key, 64))

    def nrm(shape, scale=0.1):
        return scale * jax.random.normal(next(keys), shape, jnp.float32)

    return dict(
        w_in=nrm((in_channels, D)), b_in=nrm((1, D)),
        g_ibn=1.0 + nrm((1, D)), be_ibn=nrm((1, D)),
        w_pe=nrm((pedim, D)), b_pe=nrm((1, D)),
        w_out=nrm((D, 1)), b_out=nrm((1, 1)),
        wq=nrm((nlayer, D, D)), bq=nrm((nlayer, D)),
        gq=1.0 + nrm((nlayer, D)), bqn=nrm((nlayer, D)),
        wk=nrm((nlayer, D, D)), bk=nrm((nlayer, D)),
        gk=1.0 + nrm((nlayer, D)), bkn=nrm((nlayer, D)),
        wv=nrm((nlayer, D, D)), bv=nrm((nlayer, D)),
        gv=1.0 + nrm((nlayer, D)), bvn=nrm((nlayer, D)),
        gln=1.0 + nrm((nlayer, D)), bln=nrm((nlayer, D)),
        wff=nrm((nlayer, D, D)), bff=nrm((nlayer, D)),
        gff=1.0 + nrm((nlayer, D)), bffn=nrm((nlayer, D)),
        wsk=nrm((nlayer, D, D)), bsk=nrm((nlayer, D)),
        gsk=1.0 + nrm((nlayer, D)), bskn=nrm((nlayer, D)),
    )


if __name__ == "__main__":
    N, S = 2, 8                 # node_num, seq_len
    IN_CH, D, PE_DIM = 24, 32, 12
    HEADS, NLAYER = 2, 2        # layer out_channels = D // HEADS

    key = jax.random.PRNGKey(0)
    kx, kpe, kp = jax.random.split(key, 3)

    x = jax.random.normal(kx, (N, S, IN_CH), jnp.float32)
    pe = jax.random.normal(kpe, (N, S, PE_DIM), jnp.float32)   # extra_encodings[0]

    lens = jnp.array([8, 5], dtype=jnp.int32)
    valid = (jnp.arange(S)[None, :] < lens[:, None]).astype(jnp.float32)   # (N, S)
    pad_mask = jnp.broadcast_to(valid[:, None, :], (N, S, S)).astype(jnp.float32)

    params = init_params(kp, IN_CH, D, PE_DIM, NLAYER)

    out = detour_transformer_encoder(x, pad_mask, pe, params, HEADS)
    jax.block_until_ready(out)
    assert out.shape == (N, S, 1) and out.dtype == jnp.float32
    assert bool(jnp.isfinite(out).all())

    # loose guard vs. the pure-JAX reference (kernel uses bf16 matmuls and an
    # approximate softmax reciprocal, so no bit-exactness is expected).
    ref = _reference_forward(x, pad_mask, pe, params, HEADS)
    err = float(jnp.max(jnp.abs(out - ref)))
    assert err < 0.15, f"kernel/reference mismatch: max abs err = {err}"

    print("KERNEL_OK")
</pallas_src>

<mosaic_0001>
module attributes {stable_mosaic.version = 11 : i64} {
  func.func @kernel(%arg0: i32, %arg1: memref<2x8x8xf32, #tpu.memory_space<vmem>>, %arg2: memref<2x8x128xf32, #tpu.memory_space<vmem>>, %arg3: memref<1x128x512xbf16, #tpu.memory_space<vmem>>, %arg4: memref<1x1x512xf32, #tpu.memory_space<vmem>>, %arg5: memref<1x1x512xf32, #tpu.memory_space<vmem>>, %arg6: memref<1x1x512xf32, #tpu.memory_space<vmem>>, %arg7: memref<1x1x128xf32, #tpu.memory_space<vmem>>, %arg8: memref<1x1x128xf32, #tpu.memory_space<vmem>>, %arg9: memref<1x128x128xbf16, #tpu.memory_space<vmem>>, %arg10: memref<1x1x128xf32, #tpu.memory_space<vmem>>, %arg11: memref<1x1x128xf32, #tpu.memory_space<vmem>>, %arg12: memref<1x1x128xf32, #tpu.memory_space<vmem>>, %arg13: memref<2x8x128xf32, #tpu.memory_space<vmem>>) attributes {dimension_semantics = [#tpu.dimension_semantics<arbitrary>], iteration_bounds = array<i64: 2>, scalar_prefetch = 0 : i64, scratch_operands = 0 : i64, tpu.core_type = #tpu.core_type<tc>, window_params = [{pipeline_mode = #tpu.pipeline_mode<synchronous>, transform_indices = @transform_0, window_bounds = array<i64: 2, 8, 8>}, {pipeline_mode = #tpu.pipeline_mode<synchronous>, transform_indices = @transform_1, window_bounds = array<i64: 2, 8, 128>}, {transform_indices = @transform_2, window_bounds = array<i64: 1, 128, 512>}, {transform_indices = @transform_3, window_bounds = array<i64: 1, 1, 512>}, {transform_indices = @transform_4, window_bounds = array<i64: 1, 1, 512>}, {transform_indices = @transform_5, window_bounds = array<i64: 1, 1, 512>}, {transform_indices = @transform_6, window_bounds = array<i64: 1, 1, 128>}, {transform_indices = @transform_7, window_bounds = array<i64: 1, 1, 128>}, {transform_indices = @transform_8, window_bounds = array<i64: 1, 128, 128>}, {transform_indices = @transform_9, window_bounds = array<i64: 1, 1, 128>}, {transform_indices = @transform_10, window_bounds = array<i64: 1, 1, 128>}, {transform_indices = @transform_11, window_bounds = array<i64: 1, 1, 128>}, {pipeline_mode = #tpu.pipeline_mode<synchronous>, transform_indices = @transform_12, window_bounds = array<i64: 2, 8, 128>}]} {
    %c0_i32 = arith.constant 0 : i32
    %0 = arith.cmpi eq, %arg0, %c0_i32 : i32
    %1 = arith.extui %0 : i1 to i32
    %c0_i32_0 = arith.constant 0 : i32
    %2 = arith.cmpi ne, %1, %c0_i32_0 : i32
    scf.if %2 {
      %c0_68 = arith.constant 0 : index
      %c0_69 = arith.constant 0 : index
      %c0_70 = arith.constant 0 : index
      %176 = vector.load %arg2[%c0_68, %c0_69, %c0_70] : memref<2x8x128xf32, #tpu.memory_space<vmem>>, vector<2x8x128xf32>
      %c0_71 = arith.constant 0 : index
      %c0_72 = arith.constant 0 : index
      %c0_73 = arith.constant 0 : index
      %177 = vector.load %arg13[%c0_71, %c0_72, %c0_73] : memref<2x8x128xf32, #tpu.memory_space<vmem>>, vector<2x8x128xf32>
      tpu.vector_store %arg13[%c0_71, %c0_72, %c0_73], %176 {strides = array<i32>} : memref<2x8x128xf32, #tpu.memory_space<vmem>>, vector<2x8x128xf32>,
    } else {
    }
    %c0 = arith.constant 0 : index
    %c0_1 = arith.constant 0 : index
    %c0_2 = arith.constant 0 : index
    %3 = vector.load %arg13[%c0, %c0_1, %c0_2] : memref<2x8x128xf32, #tpu.memory_space<vmem>>, vector<2x8x128xf32>
    %4 = vector.shape_cast %3 : vector<2x8x128xf32> to vector<16x128xf32>
    %c0_3 = arith.constant 0 : index
    %c0_4 = arith.constant 0 : index
    %c0_5 = arith.constant 0 : index
    %5 = vector.load %arg3[%c0_3, %c0_4, %c0_5] : memref<1x128x512xbf16, #tpu.memory_space<vmem>>, vector<1x128x512xbf16>
    %6 = vector.shape_cast %5 : vector<1x128x512xbf16> to vector<128x512xbf16>
    %c0_6 = arith.constant 0 : index
    %c0_7 = arith.constant 0 : index
    %c0_8 = arith.constant 0 : index
    %7 = vector.load %arg4[%c0_6, %c0_7, %c0_8] : memref<1x1x512xf32, #tpu.memory_space<vmem>>, vector<1x1x512xf32>
    %8 = vector.shape_cast %7 : vector<1x1x512xf32> to vector<1x512xf32>
    %9 = arith.truncf %4 : vector<16x128xf32> to vector<16x128xbf16>
    %cst = arith.constant dense<0.000000e+00> : vector<16x512xf32>
    %10 = tpu.matmul %9, %6, %cst {dimension_numbers = #tpu.dot_dimension_numbers<[1], [0], [0], [1], [0, 0, 1, 1], [], []>} : vector<16x128xbf16>, vector<128x512xbf16>, vector<16x512xf32> -> vector<16x512xf32>
    %11 = vector.broadcast %8 : vector<1x512xf32> to vector<16x512xf32>
    %12 = arith.addf %10, %11 : vector<16x512xf32>
    %c0_9 = arith.constant 0 : index
    %c0_10 = arith.constant 0 : index
    %c0_11 = arith.constant 0 : index
    %13 = vector.load %arg5[%c0_9, %c0_10, %c0_11] : memref<1x1x512xf32, #tpu.memory_space<vmem>>, vector<1x1x512xf32>
    %14 = vector.shape_cast %13 : vector<1x1x512xf32> to vector<1x512xf32>
    %c0_12 = arith.constant 0 : index
    %c0_13 = arith.constant 0 : index
    %c0_14 = arith.constant 0 : index
    %15 = vector.load %arg6[%c0_12, %c0_13, %c0_14] : memref<1x1x512xf32, #tpu.memory_space<vmem>>, vector<1x1x512xf32>
    %16 = vector.shape_cast %15 : vector<1x1x512xf32> to vector<1x512xf32>
    %cst_15 = arith.constant dense<0.000000e+00> : vector<512xf32>
    %17 = vector.multi_reduction <add>, %12, %cst_15 [0] : vector<16x512xf32> to vector<512xf32>
    %18 = vector.shape_cast %17 : vector<512xf32> to vector<1x512xf32>
    %19 = arith.mulf %12, %12 : vector<16x512xf32>
    %cst_16 = arith.constant dense<0.000000e+00> : vector<512xf32>
    %20 = vector.multi_reduction <add>, %19, %cst_16 [0] : vector<16x512xf32> to vector<512xf32>
    %21 = vector.shape_cast %20 : vector<512xf32> to vector<1x512xf32>
    %cst_17 = arith.constant 6.250000e-02 : f32
    %22 = vector.broadcast %cst_17 : f32 to vector<1x512xf32>
    %23 = arith.mulf %18, %22 : vector<1x512xf32>
    %cst_18 = arith.constant 6.250000e-02 : f32
    %24 = vector.broadcast %cst_18 : f32 to vector<1x512xf32>
    %25 = arith.mulf %21, %24 : vector<1x512xf32>
    %26 = arith.mulf %23, %23 : vector<1x512xf32>
    %27 = arith.subf %25, %26 : vector<1x512xf32>
    %cst_19 = arith.constant 0.000000e+00 : f32
    %28 = vector.broadcast %cst_19 : f32 to vector<1x512xf32>
    %29 = arith.maximumf %27, %28 : vector<1x512xf32>
    %30 = vector.broadcast %23 : vector<1x512xf32> to vector<16x512xf32>
    %31 = arith.subf %12, %30 : vector<16x512xf32>
    %cst_20 = arith.constant 9.99999974E-6 : f32
    %32 = vector.broadcast %cst_20 : f32 to vector<1x512xf32>
    %33 = arith.addf %29, %32 : vector<1x512xf32>
    %34 = math.rsqrt %33 : vector<1x512xf32>
    %35 = vector.broadcast %34 : vector<1x512xf32> to vector<16x512xf32>
    %36 = arith.mulf %31, %35 : vector<16x512xf32>
    %37 = vector.broadcast %14 : vector<1x512xf32> to vector<16x512xf32>
    %38 = arith.mulf %36, %37 : vector<16x512xf32>
    %39 = vector.broadcast %16 : vector<1x512xf32> to vector<16x512xf32>
    %40 = arith.addf %38, %39 : vector<16x512xf32>
    %41 = vector.extract_strided_slice %40 {offsets = [0, 0], sizes = [16, 128], strides = [1, 1]} : vector<16x512xf32> to vector<16x128xf32>
    %42 = vector.shape_cast %41 : vector<16x128xf32> to vector<2x8x128xf32>
    %43 = vector.extract_strided_slice %40 {offsets = [0, 128], sizes = [16, 128], strides = [1, 1]} : vector<16x512xf32> to vector<16x128xf32>
    %44 = vector.shape_cast %43 : vector<16x128xf32> to vector<2x8x128xf32>
    %45 = vector.extract_strided_slice %40 {offsets = [0, 256], sizes = [16, 128], strides = [1, 1]} : vector<16x512xf32> to vector<16x128xf32>
    %46 = vector.shape_cast %45 : vector<16x128xf32> to vector<2x8x128xf32>
    %47 = vector.extract_strided_slice %40 {offsets = [0, 384], sizes = [16, 128], strides = [1, 1]} : vector<16x512xf32> to vector<16x128xf32>
    %c0_21 = arith.constant 0 : index
    %c0_22 = arith.constant 0 : index
    %c0_23 = arith.constant 0 : index
    %48 = vector.load %arg1[%c0_21, %c0_22, %c0_23] : memref<2x8x8xf32, #tpu.memory_space<vmem>>, vector<2x8x8xf32>
    %49 = vector.extract_strided_slice %42 {offsets = [0, 0, 0], sizes = [2, 8, 64], strides = [1, 1, 1]} : vector<2x8x128xf32> to vector<2x8x64xf32>
    %50 = vector.extract_strided_slice %42 {offsets = [0, 0, 64], sizes = [2, 8, 64], strides = [1, 1, 1]} : vector<2x8x128xf32> to vector<2x8x64xf32>
    %51 = tpu.concatenate %49, %50 in 0 : vector<2x8x64xf32>, vector<2x8x64xf32> -> vector<4x8x64xf32>
    %52 = arith.truncf %51 : vector<4x8x64xf32> to vector<4x8x64xbf16>
    %53 = vector.extract_strided_slice %44 {offsets = [0, 0, 0], sizes = [2, 8, 64], strides = [1, 1, 1]} : vector<2x8x128xf32> to vector<2x8x64xf32>
    %54 = vector.extract_strided_slice %44 {offsets = [0, 0, 64], sizes = [2, 8, 64], strides = [1, 1, 1]} : vector<2x8x128xf32> to vector<2x8x64xf32>
    %55 = tpu.concatenate %53, %54 in 0 : vector<2x8x64xf32>, vector<2x8x64xf32> -> vector<4x8x64xf32>
    %56 = arith.truncf %55 : vector<4x8x64xf32> to vector<4x8x64xbf16>
    %57 = vector.extract_strided_slice %46 {offsets = [0, 0, 0], sizes = [2, 8, 64], strides = [1, 1, 1]} : vector<2x8x128xf32> to vector<2x8x64xf32>
    %58 = vector.extract_strided_slice %46 {offsets = [0, 0, 64], sizes = [2, 8, 64], strides = [1, 1, 1]} : vector<2x8x128xf32> to vector<2x8x64xf32>
    %59 = tpu.concatenate %57, %58 in 0 : vector<2x8x64xf32>, vector<2x8x64xf32> -> vector<4x8x64xf32>
    %60 = arith.truncf %59 : vector<4x8x64xf32> to vector<4x8x64xbf16>
    "tpu.trace_start"() <{level = 10 : i32, message = "bqc,bkc->bqk"}> : () -> ()
    %cst_24 = arith.constant dense<0.000000e+00> : vector<4x8x8xf32>
    %61 = tpu.matmul %52, %56, %cst_24 {dimension_numbers = #tpu.dot_dimension_numbers<[2], [2], [1], [1], [0, 0, 0, 1, 1, 1], [0], [0]>} : vector<4x8x64xbf16>, vector<4x8x64xbf16>, vector<4x8x8xf32> -> vector<4x8x8xf32>
    "tpu.trace_stop"() : () -> ()
    %62 = vector.extract_strided_slice %61 {offsets = [0, 0, 0], sizes = [2, 8, 8], strides = [1, 1, 1]} : vector<4x8x8xf32> to vector<2x8x8xf32>
    %63 = arith.mulf %62, %48 : vector<2x8x8xf32>
    %64 = vector.extract_strided_slice %61 {offsets = [2, 0, 0], sizes = [2, 8, 8], strides = [1, 1, 1]} : vector<4x8x8xf32> to vector<2x8x8xf32>
    %65 = arith.mulf %64, %48 : vector<2x8x8xf32>
    %66 = tpu.concatenate %63, %65 in 0 : vector<2x8x8xf32>, vector<2x8x8xf32> -> vector<4x8x8xf32>
    %cst_25 = arith.constant dense<0xFF800000> : vector<4x8xf32>
    %67 = vector.multi_reduction <maximumf>, %66, %cst_25 [2] : vector<4x8x8xf32> to vector<4x8xf32>
    %68 = vector.shape_cast %67 : vector<4x8xf32> to vector<4x8x1xf32>
    %69 = vector.broadcast %68 : vector<4x8x1xf32> to vector<4x8x8xf32>
    %70 = arith.subf %66, %69 : vector<4x8x8xf32>
    %71 = math.exp %70 : vector<4x8x8xf32>
    %cst_26 = arith.constant dense<0.000000e+00> : vector<4x8xf32>
    %72 = vector.multi_reduction <add>, %71, %cst_26 [2] : vector<4x8x8xf32> to vector<4x8xf32>
    %73 = vector.shape_cast %72 : vector<4x8xf32> to vector<4x8x1xf32>
    %74 = tpu.reciprocal %73 {approx = true} : vector<4x8x1xf32> -> vector<4x8x1xf32>
    %75 = vector.broadcast %74 : vector<4x8x1xf32> to vector<4x8x8xf32>
    %76 = arith.mulf %71, %75 : vector<4x8x8xf32>
    %77 = arith.truncf %76 : vector<4x8x8xf32> to vector<4x8x8xbf16>
    "tpu.trace_start"() <{level = 10 : i32, message = "bqk,bkc->bqc"}> : () -> ()
    %cst_27 = arith.constant dense<0.000000e+00> : vector<4x8x64xf32>
    %78 = tpu.matmul %77, %60, %cst_27 {dimension_numbers = #tpu.dot_dimension_numbers<[2], [1], [1], [2], [0, 0, 0, 1, 1, 2], [0], [0]>} : vector<4x8x8xbf16>, vector<4x8x64xbf16>, vector<4x8x64xf32> -> vector<4x8x64xf32>
    "tpu.trace_stop"() : () -> ()
    %79 = vector.extract_strided_slice %78 {offsets = [0, 0, 0], sizes = [2, 8, 64], strides = [1, 1, 1]} : vector<4x8x64xf32> to vector<2x8x64xf32>
    %80 = vector.extract_strided_slice %78 {offsets = [2, 0, 0], sizes = [2, 8, 64], strides = [1, 1, 1]} : vector<4x8x64xf32> to vector<2x8x64xf32>
    %81 = tpu.concatenate %79, %80 in 2 : vector<2x8x64xf32>, vector<2x8x64xf32> -> vector<2x8x128xf32>
    %82 = vector.shape_cast %81 : vector<2x8x128xf32> to vector<16x128xf32>
    %c0_28 = arith.constant 0 : index
    %c0_29 = arith.constant 0 : index
    %c0_30 = arith.constant 0 : index
    %83 = vector.load %arg7[%c0_28, %c0_29, %c0_30] : memref<1x1x128xf32, #tpu.memory_space<vmem>>, vector<1x1x128xf32>
    %84 = vector.shape_cast %83 : vector<1x1x128xf32> to vector<1x128xf32>
    %c0_31 = arith.constant 0 : index
    %c0_32 = arith.constant 0 : index
    %c0_33 = arith.constant 0 : index
    %85 = vector.load %arg8[%c0_31, %c0_32, %c0_33] : memref<1x1x128xf32, #tpu.memory_space<vmem>>, vector<1x1x128xf32>
    %86 = vector.shape_cast %85 : vector<1x1x128xf32> to vector<1x128xf32>
    %87 = arith.addf %82, %4 : vector<16x128xf32>
    %cst_34 = arith.constant dense<0.000000e+00> : vector<16xf32>
    %88 = vector.multi_reduction <add>, %87, %cst_34 [1] : vector<16x128xf32> to vector<16xf32>
    %89 = vector.shape_cast %88 : vector<16xf32> to vector<16x1xf32>
    %90 = arith.mulf %87, %87 : vector<16x128xf32>
    %cst_35 = arith.constant dense<0.000000e+00> : vector<16xf32>
    %91 = vector.multi_reduction <add>, %90, %cst_35 [1] : vector<16x128xf32> to vector<16xf32>
    %92 = vector.shape_cast %91 : vector<16xf32> to vector<16x1xf32>
    %cst_36 = arith.constant 3.125000e-02 : f32
    %93 = vector.broadcast %cst_36 : f32 to vector<16x1xf32>
    %94 = arith.mulf %89, %93 : vector<16x1xf32>
    %cst_37 = arith.constant 3.125000e-02 : f32
    %95 = vector.broadcast %cst_37 : f32 to vector<16x1xf32>
    %96 = arith.mulf %92, %95 : vector<16x1xf32>
    %97 = arith.mulf %94, %94 : vector<16x1xf32>
    %98 = arith.subf %96, %97 : vector<16x1xf32>
    %cst_38 = arith.constant 0.000000e+00 : f32
    %99 = vector.broadcast %cst_38 : f32 to vector<16x1xf32>
    %100 = arith.maximumf %98, %99 : vector<16x1xf32>
    %101 = vector.broadcast %94 : vector<16x1xf32> to vector<16x128xf32>
    %102 = arith.subf %87, %101 : vector<16x128xf32>
    %cst_39 = arith.constant 9.99999974E-6 : f32
    %103 = vector.broadcast %cst_39 : f32 to vector<16x1xf32>
    %104 = arith.addf %100, %103 : vector<16x1xf32>
    %105 = math.rsqrt %104 : vector<16x1xf32>
    %106 = vector.broadcast %105 : vector<16x1xf32> to vector<16x128xf32>
    %107 = arith.mulf %102, %106 : vector<16x128xf32>
    %108 = vector.broadcast %84 : vector<1x128xf32> to vector<16x128xf32>
    %109 = arith.mulf %107, %108 : vector<16x128xf32>
    %110 = vector.broadcast %86 : vector<1x128xf32> to vector<16x128xf32>
    %111 = arith.addf %109, %110 : vector<16x128xf32>
    %c0_40 = arith.constant 0 : index
    %c0_41 = arith.constant 0 : index
    %c0_42 = arith.constant 0 : index
    %112 = vector.load %arg9[%c0_40, %c0_41, %c0_42] : memref<1x128x128xbf16, #tpu.memory_space<vmem>>, vector<1x128x128xbf16>
    %113 = vector.shape_cast %112 : vector<1x128x128xbf16> to vector<128x128xbf16>
    %c0_43 = arith.constant 0 : index
    %c0_44 = arith.constant 0 : index
    %c0_45 = arith.constant 0 : index
    %114 = vector.load %arg10[%c0_43, %c0_44, %c0_45] : memref<1x1x128xf32, #tpu.memory_space<vmem>>, vector<1x1x128xf32>
    %115 = vector.shape_cast %114 : vector<1x1x128xf32> to vector<1x128xf32>
    %116 = arith.truncf %111 : vector<16x128xf32> to vector<16x128xbf16>
    %cst_46 = arith.constant dense<0.000000e+00> : vector<16x128xf32>
    %117 = tpu.matmul %116, %113, %cst_46 {dimension_numbers = #tpu.dot_dimension_numbers<[1], [0], [0], [1], [0, 0, 1, 1], [], []>} : vector<16x128xbf16>, vector<128x128xbf16>, vector<16x128xf32> -> vector<16x128xf32>
    %118 = vector.broadcast %115 : vector<1x128xf32> to vector<16x128xf32>
    %119 = arith.addf %117, %118 : vector<16x128xf32>
    %c0_47 = arith.constant 0 : index
    %c0_48 = arith.constant 0 : index
    %c0_49 = arith.constant 0 : index
    %120 = vector.load %arg11[%c0_47, %c0_48, %c0_49] : memref<1x1x128xf32, #tpu.memory_space<vmem>>, vector<1x1x128xf32>
    %121 = vector.shape_cast %120 : vector<1x1x128xf32> to vector<1x128xf32>
    %c0_50 = arith.constant 0 : index
    %c0_51 = arith.constant 0 : index
    %c0_52 = arith.constant 0 : index
    %122 = vector.load %arg12[%c0_50, %c0_51, %c0_52] : memref<1x1x128xf32, #tpu.memory_space<vmem>>, vector<1x1x128xf32>
    %123 = vector.shape_cast %122 : vector<1x1x128xf32> to vector<1x128xf32>
    %cst_53 = arith.constant dense<0.000000e+00> : vector<128xf32>
    %124 = vector.multi_reduction <add>, %119, %cst_53 [0] : vector<16x128xf32> to vector<128xf32>
    %125 = vector.shape_cast %124 : vector<128xf32> to vector<1x128xf32>
    %126 = arith.mulf %119, %119 : vector<16x128xf32>
    %cst_54 = arith.constant dense<0.000000e+00> : vector<128xf32>
    %127 = vector.multi_reduction <add>, %126, %cst_54 [0] : vector<16x128xf32> to vector<128xf32>
    %128 = vector.shape_cast %127 : vector<128xf32> to vector<1x128xf32>
    %cst_55 = arith.constant 6.250000e-02 : f32
    %129 = vector.broadcast %cst_55 : f32 to vector<1x128xf32>
    %130 = arith.mulf %125, %129 : vector<1x128xf32>
    %cst_56 = arith.constant 6.250000e-02 : f32
    %131 = vector.broadcast %cst_56 : f32 to vector<1x128xf32>
    %132 = arith.mulf %128, %131 : vector<1x128xf32>
    %133 = arith.mulf %130, %130 : vector<1x128xf32>
    %134 = arith.subf %132, %133 : vector<1x128xf32>
    %cst_57 = arith.constant 0.000000e+00 : f32
    %135 = vector.broadcast %cst_57 : f32 to vector<1x128xf32>
    %136 = arith.maximumf %134, %135 : vector<1x128xf32>
    %137 = vector.broadcast %130 : vector<1x128xf32> to vector<16x128xf32>
    %138 = arith.subf %119, %137 : vector<16x128xf32>
    %cst_58 = arith.constant 9.99999974E-6 : f32
    %139 = vector.broadcast %cst_58 : f32 to vector<1x128xf32>
    %140 = arith.addf %136, %139 : vector<1x128xf32>
    %141 = math.rsqrt %140 : vector<1x128xf32>
    %142 = vector.broadcast %141 : vector<1x128xf32> to vector<16x128xf32>
    %143 = arith.mulf %138, %142 : vector<16x128xf32>
    %144 = vector.broadcast %121 : vector<1x128xf32> to vector<16x128xf32>
    %145 = arith.mulf %143, %144 : vector<16x128xf32>
    %146 = vector.broadcast %123 : vector<1x128xf32> to vector<16x128xf32>
    %147 = arith.addf %145, %146 : vector<16x128xf32>
    %148 = arith.addf %111, %147 : vector<16x128xf32>
    %cst_59 = arith.constant dense<0.000000e+00> : vector<16xf32>
    %149 = vector.multi_reduction <add>, %148, %cst_59 [1] : vector<16x128xf32> to vector<16xf32>
    %150 = vector.shape_cast %149 : vector<16xf32> to vector<16x1xf32>
    %151 = arith.mulf %148, %148 : vector<16x128xf32>
    %cst_60 = arith.constant dense<0.000000e+00> : vector<16xf32>
    %152 = vector.multi_reduction <add>, %151, %cst_60 [1] : vector<16x128xf32> to vector<16xf32>
    %153 = vector.shape_cast %152 : vector<16xf32> to vector<16x1xf32>
    %cst_61 = arith.constant 3.125000e-02 : f32
    %154 = vector.broadcast %cst_61 : f32 to vector<16x1xf32>
    %155 = arith.mulf %150, %154 : vector<16x1xf32>
    %cst_62 = arith.constant 3.125000e-02 : f32
    %156 = vector.broadcast %cst_62 : f32 to vector<16x1xf32>
    %157 = arith.mulf %153, %156 : vector<16x1xf32>
    %158 = arith.mulf %155, %155 : vector<16x1xf32>
    %159 = arith.subf %157, %158 : vector<16x1xf32>
    %cst_63 = arith.constant 0.000000e+00 : f32
    %160 = vector.broadcast %cst_63 : f32 to vector<16x1xf32>
    %161 = arith.maximumf %159, %160 : vector<16x1xf32>
    %162 = vector.broadcast %155 : vector<16x1xf32> to vector<16x128xf32>
    %163 = arith.subf %148, %162 : vector<16x128xf32>
    %cst_64 = arith.constant 9.99999974E-6 : f32
    %164 = vector.broadcast %cst_64 : f32 to vector<16x1xf32>
    %165 = arith.addf %161, %164 : vector<16x1xf32>
    %166 = math.rsqrt %165 : vector<16x1xf32>
    %167 = vector.broadcast %166 : vector<16x1xf32> to vector<16x128xf32>
    %168 = arith.mulf %163, %167 : vector<16x128xf32>
    %169 = vector.broadcast %84 : vector<1x128xf32> to vector<16x128xf32>
    %170 = arith.mulf %168, %169 : vector<16x128xf32>
    %171 = vector.broadcast %86 : vector<1x128xf32> to vector<16x128xf32>
    %172 = arith.addf %170, %171 : vector<16x128xf32>
    %173 = arith.addf %172, %47 : vector<16x128xf32>
    %174 = vector.shape_cast %173 : vector<16x128xf32> to vector<2x8x128xf32>
    %c0_65 = arith.constant 0 : index
    %c0_66 = arith.constant 0 : index
    %c0_67 = arith.constant 0 : index
    %175 = vector.load %arg13[%c0_65, %c0_66, %c0_67] : memref<2x8x128xf32, #tpu.memory_space<vmem>>, vector<2x8x128xf32>
    tpu.vector_store %arg13[%c0_65, %c0_66, %c0_67], %174 {strides = array<i32>} : memref<2x8x128xf32, #tpu.memory_space<vmem>>, vector<2x8x128xf32>,
    return
  }
  func.func @transform_0(%arg0: i32) -> (i32, i32, i32) {
    %c0_i32 = arith.constant 0 : i32
    %c0_i32_0 = arith.constant 0 : i32
    %c0_i32_1 = arith.constant 0 : i32
    %c0_i32_2 = arith.constant 0 : i32
    return %c0_i32, %c0_i32_0, %c0_i32_1 : i32, i32, i32
  }
  func.func @transform_1(%arg0: i32) -> (i32, i32, i32) {
    %c0_i32 = arith.constant 0 : i32
    %c0_i32_0 = arith.constant 0 : i32
    %c0_i32_1 = arith.constant 0 : i32
    %c0_i32_2 = arith.constant 0 : i32
    return %c0_i32, %c0_i32_0, %c0_i32_1 : i32, i32, i32
  }
  func.func @transform_2(%arg0: i32) -> (i32, i32, i32) {
    %c0_i32 = arith.constant 0 : i32
    %c0_i32_0 = arith.constant 0 : i32
    %c0_i32_1 = arith.constant 0 : i32
    return %arg0, %c0_i32, %c0_i32_0 : i32, i32, i32
  }
  func.func @transform_3(%arg0: i32) -> (i32, i32, i32) {
    %c0_i32 = arith.constant 0 : i32
    %c0_i32_0 = arith.constant 0 : i32
    %c0_i32_1 = arith.constant 0 : i32
    return %arg0, %c0_i32, %c0_i32_0 : i32, i32, i32
  }
  func.func @transform_4(%arg0: i32) -> (i32, i32, i32) {
    %c0_i32 = arith.constant 0 : i32
    %c0_i32_0 = arith.constant 0 : i32
    %c0_i32_1 = arith.constant 0 : i32
    return %arg0, %c0_i32, %c0_i32_0 : i32, i32, i32
  }
  func.func @transform_5(%arg0: i32) -> (i32, i32, i32) {
    %c0_i32 = arith.constant 0 : i32
    %c0_i32_0 = arith.constant 0 : i32
    %c0_i32_1 = arith.constant 0 : i32
    return %arg0, %c0_i32, %c0_i32_0 : i32, i32, i32
  }
  func.func @transform_6(%arg0: i32) -> (i32, i32, i32) {
    %c0_i32 = arith.constant 0 : i32
    %c0_i32_0 = arith.constant 0 : i32
    %c0_i32_1 = arith.constant 0 : i32
    return %arg0, %c0_i32, %c0_i32_0 : i32, i32, i32
  }
  func.func @transform_7(%arg0: i32) -> (i32, i32, i32) {
    %c0_i32 = arith.constant 0 : i32
    %c0_i32_0 = arith.constant 0 : i32
    %c0_i32_1 = arith.constant 0 : i32
    return %arg0, %c0_i32, %c0_i32_0 : i32, i32, i32
  }
  func.func @transform_8(%arg0: i32) -> (i32, i32, i32) {
    %c0_i32 = arith.constant 0 : i32
    %c0_i32_0 = arith.constant 0 : i32
    %c0_i32_1 = arith.constant 0 : i32
    return %arg0, %c0_i32, %c0_i32_0 : i32, i32, i32
  }
  func.func @transform_9(%arg0: i32) -> (i32, i32, i32) {
    %c0_i32 = arith.constant 0 : i32
    %c0_i32_0 = arith.constant 0 : i32
    %c0_i32_1 = arith.constant 0 : i32
    return %arg0, %c0_i32, %c0_i32_0 : i32, i32, i32
  }
  func.func @transform_10(%arg0: i32) -> (i32, i32, i32) {
    %c0_i32 = arith.constant 0 : i32
    %c0_i32_0 = arith.constant 0 : i32
    %c0_i32_1 = arith.constant 0 : i32
    return %arg0, %c0_i32, %c0_i32_0 : i32, i32, i32
  }
  func.func @transform_11(%arg0: i32) -> (i32, i32, i32) {
    %c0_i32 = arith.constant 0 : i32
    %c0_i32_0 = arith.constant 0 : i32
    %c0_i32_1 = arith.constant 0 : i32
    return %arg0, %c0_i32, %c0_i32_0 : i32, i32, i32
  }
  func.func @transform_12(%arg0: i32) -> (i32, i32, i32) {
    %c0_i32 = arith.constant 0 : i32
    %c0_i32_0 = arith.constant 0 : i32
    %c0_i32_1 = arith.constant 0 : i32
    %c0_i32_2 = arith.constant 0 : i32
    return %c0_i32, %c0_i32_0, %c0_i32_1 : i32, i32, i32
  }
}

</mosaic_0001>

<llo_original>
// kernel: tpu_custom_call.1
$region0: #{tpu_custom_call.1}
  #allocation0 [shape = 'u32[]', space=smem, size = 0x4, offset = 0x4, fixed_abs, tag = 'smem constant byte address 0x4 - core index']
  #allocation1 [shape = 'u32[144,128]{1,0:T(1,128)}', space=vmem, size = 0x12000, scoped, tag = 'internal scratch']
  %s0 = inlined_call_operand.vmem [shape: f32[2,8,8], index: 0, kind: input, shape index: {}]
  %s1 = inlined_call_operand.hbm [shape: f32[2,8,128], index: 1, kind: input, shape index: {}, may-alias: {1,12}]
  %s2 = inlined_call_operand.hbm [shape: bf16[2,128,512], index: 2, kind: input, shape index: {}]
  %s3 = inlined_call_operand.vmem [shape: f32[2,1,512], index: 3, kind: input, shape index: {}]
  %s4 = inlined_call_operand.vmem [shape: f32[2,1,512], index: 4, kind: input, shape index: {}]
  %s5 = inlined_call_operand.vmem [shape: f32[2,1,512], index: 5, kind: input, shape index: {}]
  %s6 = inlined_call_operand.vmem [shape: f32[2,1,128], index: 6, kind: input, shape index: {}]
  %s7 = inlined_call_operand.vmem [shape: f32[2,1,128], index: 7, kind: input, shape index: {}]
  %s8 = inlined_call_operand.hbm [shape: bf16[2,128,128], index: 8, kind: input, shape index: {}]
  %s9 = inlined_call_operand.hbm [shape: f32[2,1,128], index: 9, kind: input, shape index: {}]
  %s10 = inlined_call_operand.hbm [shape: f32[2,1,128], index: 10, kind: input, shape index: {}]
  %s11 = inlined_call_operand.hbm [shape: f32[2,1,128], index: 11, kind: input, shape index: {}]
  %s12 = inlined_call_operand.hbm [shape: f32[2,8,128], index: 12, kind: output, shape index: {}, may-alias: {1,12}]
  %s13 = sld [smem:[#allocation0]]
  $region109: #{tpu_custom_call.1} parent=0
    _
  %s15 = ssub.s32 1, %s13
  %s16 = scalar_select 0, %s15, %s13
  $region1: #{tpu_custom_call.1} parent=0
    #allocation2 [shape = 'u8[8192]{0}', space=vmem, size = 0x2000, scoped, tag = 'input window, operand 1, single buffered']
    #allocation3 [shape = 's32[2]{0}', space=sflag, size = 0x8, scoped, tag = 'scoped memory for tpu_custom_call.1']
    #allocation4 [shape = 's32[2]{0}', space=sflag, size = 0x8, scoped, tag = 'scoped memory for tpu_custom_call.1']
    #allocation5 [shape = 'u8[262144]{0}', space=vmem, size = 0x40000, scoped, tag = 'input window, operand 2']
    #allocation6 [shape = 's32[2]{0}', space=sflag, size = 0x8, scoped, tag = 'scoped memory for tpu_custom_call.1']
    #allocation7 [shape = 'u8[65536]{0}', space=vmem, size = 0x10000, scoped, tag = 'input window, operand 8']
    #allocation8 [shape = 'u8[1024]{0}', space=vmem, size = 0x400, scoped, tag = 'input window, operand 9']
    #allocation9 [shape = 's32[2]{0}', space=sflag, size = 0x8, scoped, tag = 'scoped memory for tpu_custom_call.1']
    #allocation10 [shape = 'u8[1024]{0}', space=vmem, size = 0x400, scoped, tag = 'input window, operand 10']
    #allocation11 [shape = 'u8[1024]{0}', space=vmem, size = 0x400, scoped, tag = 'input window, operand 11']
    #allocation12 [shape = 's32[2]{0}', space=sflag, size = 0x8, scoped, tag = 'scoped memory for tpu_custom_call.1']
    #allocation13 [shape = 'u8[8192]{0}', space=vmem, size = 0x2000, scoped, tag = 'output window, operand 0, single buffered']
    %17 = vsyncpa [#allocation3], 0
    %18 = vsyncpa [#allocation6], 0
    %s19 = scalar_lea.sflag [#allocation6], 1
    %20 = vsyncpa %s19, 0
    %21 = vsyncpa [#allocation9], 0
    %s22 = scalar_lea.sflag [#allocation9], 1
    %23 = vsyncpa %s22, 0
    %24 = vsyncpa [#allocation12], 0
    %s25 = scalar_lea.sflag [#allocation12], 1
    %26 = vsyncpa %s25, 0
    %27 = vsyncpa [#allocation4], 0
    loop: start=0, step=1, limit=4
    $region2: #{tpu_custom_call.1} parent=1 // loop_pre_header
      _
    $region3: #{tpu_custom_call.1} parent=1 // loop_header
      %s29 = sphi 0, %s33
      %p30 = scmp.ge.s32.totalorder %s29, 4
      %s37 = sphi 0, %s37
      %s39 = sphi 0, %s37
      %s40 = sphi 0, %s39
      %s54 = sphi 0, %s40
      %s58 = sphi 0, %s58
      %s60 = sphi 0, %s58
      %s61 = sphi 0, %s60
      %s75 = sphi 0, %s61
      %s81 = sphi 0, %s83
      %s84 = sphi 0, %s81
      %s85 = sphi 0, %s84
      %s101 = sphi 0, %s85
      %s107 = sphi 0, %s109
      %s110 = sphi 0, %s107
      %s111 = sphi 0, %s110
      %s127 = sphi 0, %s111
      %s133 = sphi 0, %s135
      %s136 = sphi 0, %s133
      %s137 = sphi 0, %s136
      %s153 = sphi 0, %s137
      %s159 = sphi 0, %s161
      %s162 = sphi 0, %s159
      %s163 = sphi 0, %s162
      %s179 = sphi 0, %s163
      %s185 = sphi 0, %s187
      %s188 = sphi 0, %s185
      %s189 = sphi 0, %s188
      %s205 = sphi 0, %s189
      %s211 = sphi 0, %s213
      %s214 = sphi 0, %s211
      %s215 = sphi 0, %s214
      %s231 = sphi 0, %s215
      %s237 = sphi 0, %s239
      %s240 = sphi 0, %s237
      %s241 = sphi 0, %s240
      %s257 = sphi 0, %s241
      %s263 = sphi 0, %s265
      %s266 = sphi 0, %s263
      %s267 = sphi 0, %s266
      %s283 = sphi 0, %s267
      %s289 = sphi 0, %s291
      %s292 = sphi 0, %s289
      %s293 = sphi 0, %s292
      %s309 = sphi 0, %s293
      %s315 = sphi 0, %s317
      %s318 = sphi 0, %s315
      %s319 = sphi 0, %s318
      %s335 = sphi 0, %s319
      %s339 = sphi 0, %s339
      %s341 = sphi 0, %s339
      %s342 = sphi 0, %s341
      %s356 = sphi 0, %s342
    $region4: #{tpu_custom_call.1} parent=1 // loop_header_branch
      %32 = sbr.rel (%p30) target = $region8
    $region5: #{tpu_custom_call.1} parent=1 // loop_body
      %s34 = ssub.s32 %s29, 1
      %s35 = ssub.s32 %s29, 2
      %s36 = sadd.s32 %s29, 1
      %s38 = sadd.s32 %s37, 1
      %p41 = scmp.eq.s32.totalorder %s29, 1
      %p42 = scmp.ne.s32.totalorder %s37, %s39
      %p43 = scmp.eq.s32.totalorder %s29, 0
      %p44 = por %p42, %p43
      %p45 = scmp.ne.s32.totalorder %s37, %s39
      %p46 = scmp.eq.s32.totalorder %s34, 1
      %p47 = por %p45, %p46
      %p48 = scmp.ne.s32.totalorder %s39, %s40
      %p49 = scmp.eq.s32.totalorder %s34, 0
      %p50 = por %p48, %p49
      %p51 = scmp.ne.s32.totalorder %s39, %s40
      %p52 = scmp.eq.s32.totalorder %s35, 1
      %p53 = por %p51, %p52
      %p55 = scmp.ne.s32.totalorder %s40, %s54
      %p56 = scmp.eq.s32.totalorder %s35, 0
      %p57 = por %p55, %p56
      %s59 = sadd.s32 %s58, 1
      %p62 = scmp.eq.s32.totalorder %s29, 1
      %p63 = scmp.ne.s32.totalorder %s58, %s60
      %p64 = scmp.eq.s32.totalorder %s29, 0
      %p65 = por %p63, %p64
      %p66 = scmp.ne.s32.totalorder %s58, %s60
      %p67 = scmp.eq.s32.totalorder %s34, 1
      %p68 = por %p66, %p67
      %p69 = scmp.ne.s32.totalorder %s60, %s61
      %p70 = scmp.eq.s32.totalorder %s34, 0
      %p71 = por %p69, %p70
      %p72 = scmp.ne.s32.totalorder %s60, %s61
      %p73 = scmp.eq.s32.totalorder %s35, 1
      %p74 = por %p72, %p73
      %p76 = scmp.ne.s32.totalorder %s61, %s75
      %p77 = scmp.eq.s32.totalorder %s35, 0
      %p78 = por %p76, %p77
      %s79 = ssub.s32 %s29, %s36
      %p80 = scmp.eq.s32.totalorder %s79, 0
      %s82 = sadd.s32 %s81, 1
      %s83 = scalar_select %p80, %s81, %s82
      %p86 = pneg %p80
      %p87 = scmp.eq.s32.totalorder %s29, 1
      %p88 = por %p86, %p87
      %p89 = scmp.ne.s32.totalorder %s81, %s84
      %p90 = scmp.eq.s32.totalorder %s29, 0
      %p91 = por %p89, %p90
      %p92 = scmp.ne.s32.totalorder %s81, %s84
      %p93 = scmp.eq.s32.totalorder %s34, 1
      %p94 = por %p92, %p93
      %p95 = scmp.ne.s32.totalorder %s84, %s85
      %p96 = scmp.eq.s32.totalorder %s34, 0
      %p97 = por %p95, %p96
      %p98 = scmp.ne.s32.totalorder %s84, %s85
      %p99 = scmp.eq.s32.totalorder %s35, 1
      %p100 = por %p98, %p99
      %p102 = scmp.ne.s32.totalorder %s85, %s101
      %p103 = scmp.eq.s32.totalorder %s35, 0
      %p104 = por %p102, %p103
      %s105 = ssub.s32 %s29, %s36
      %p106 = scmp.eq.s32.totalorder %s105, 0
      %s108 = sadd.s32 %s107, 1
      %s109 = scalar_select %p106, %s107, %s108
      %p112 = pneg %p106
      %p113 = scmp.eq.s32.totalorder %s29, 1
      %p114 = por %p112, %p113
      %p115 = scmp.ne.s32.totalorder %s107, %s110
      %p116 = scmp.eq.s32.totalorder %s29, 0
      %p117 = por %p115, %p116
      %p118 = scmp.ne.s32.totalorder %s107, %s110
      %p119 = scmp.eq.s32.totalorder %s34, 1
      %p120 = por %p118, %p119
      %p121 = scmp.ne.s32.totalorder %s110, %s111
      %p122 = scmp.eq.s32.totalorder %s34, 0
      %p123 = por %p121, %p122
      %p124 = scmp.ne.s32.totalorder %s110, %s111
      %p125 = scmp.eq.s32.totalorder %s35, 1
      %p126 = por %p124, %p125
      %p128 = scmp.ne.s32.totalorder %s111, %s127
      %p129 = scmp.eq.s32.totalorder %s35, 0
      %p130 = por %p128, %p129
      %s131 = ssub.s32 %s29, %s36
      %p132 = scmp.eq.s32.totalorder %s131, 0
      %s134 = sadd.s32 %s133, 1
      %s135 = scalar_select %p132, %s133, %s134
      %p138 = pneg %p132
      %p139 = scmp.eq.s32.totalorder %s29, 1
      %p140 = por %p138, %p139
      %p141 = scmp.ne.s32.totalorder %s133, %s136
      %p142 = scmp.eq.s32.totalorder %s29, 0
      %p143 = por %p141, %p142
      %p144 = scmp.ne.s32.totalorder %s133, %s136
      %p145 = scmp.eq.s32.totalorder %s34, 1
      %p146 = por %p144, %p145
      %p147 = scmp.ne.s32.totalorder %s136, %s137
      %p148 = scmp.eq.s32.totalorder %s34, 0
      %p149 = por %p147, %p148
      %p150 = scmp.ne.s32.totalorder %s136, %s137
      %p151 = scmp.eq.s32.totalorder %s35, 1
      %p152 = por %p150, %p151
      %p154 = scmp.ne.s32.totalorder %s137, %s153
      %p155 = scmp.eq.s32.totalorder %s35, 0
      %p156 = por %p154, %p155
      %s157 = ssub.s32 %s29, %s36
      %p158 = scmp.eq.s32.totalorder %s157, 0
      %s160 = sadd.s32 %s159, 1
      %s161 = scalar_select %p158, %s159, %s160
      %p164 = pneg %p158
      %p165 = scmp.eq.s32.totalorder %s29, 1
      %p166 = por %p164, %p165
      %p167 = scmp.ne.s32.totalorder %s159, %s162
      %p168 = scmp.eq.s32.totalorder %s29, 0
      %p169 = por %p167, %p168
      %p170 = scmp.ne.s32.totalorder %s159, %s162
      %p171 = scmp.eq.s32.totalorder %s34, 1
      %p172 = por %p170, %p171
      %p173 = scmp.ne.s32.totalorder %s162, %s163
      %p174 = scmp.eq.s32.totalorder %s34, 0
      %p175 = por %p173, %p174
      %p176 = scmp.ne.s32.totalorder %s162, %s163
      %p177 = scmp.eq.s32.totalorder %s35, 1
      %p178 = por %p176, %p177
      %p180 = scmp.ne.s32.totalorder %s163, %s179
      %p181 = scmp.eq.s32.totalorder %s35, 0
      %p182 = por %p180, %p181
      %s183 = ssub.s32 %s29, %s36
      %p184 = scmp.eq.s32.totalorder %s183, 0
      %s186 = sadd.s32 %s185, 1
      %s187 = scalar_select %p184, %s185, %s186
      %p190 = pneg %p184
      %p191 = scmp.eq.s32.totalorder %s29, 1
      %p192 = por %p190, %p191
      %p193 = scmp.ne.s32.totalorder %s185, %s188
      %p194 = scmp.eq.s32.totalorder %s29, 0
      %p195 = por %p193, %p194
      %p196 = scmp.ne.s32.totalorder %s185, %s188
      %p197 = scmp.eq.s32.totalorder %s34, 1
      %p198 = por %p196, %p197
      %p199 = scmp.ne.s32.totalorder %s188, %s189
      %p200 = scmp.eq.s32.totalorder %s34, 0
      %p201 = por %p199, %p200
      %p202 = scmp.ne.s32.totalorder %s188, %s189
      %p203 = scmp.eq.s32.totalorder %s35, 1
      %p204 = por %p202, %p203
      %p206 = scmp.ne.s32.totalorder %s189, %s205
      %p207 = scmp.eq.s32.totalorder %s35, 0
      %p208 = por %p206, %p207
      %s209 = ssub.s32 %s29, %s36
      %p210 = scmp.eq.s32.totalorder %s209, 0
      %s212 = sadd.s32 %s211, 1
      %s213 = scalar_select %p210, %s211, %s212
      %p216 = pneg %p210
      %p217 = scmp.eq.s32.totalorder %s29, 1
      %p218 = por %p216, %p217
      %p219 = scmp.ne.s32.totalorder %s211, %s214
      %p220 = scmp.eq.s32.totalorder %s29, 0
      %p221 = por %p219, %p220
      %p222 = scmp.ne.s32.totalorder %s211, %s214
      %p223 = scmp.eq.s32.totalorder %s34, 1
      %p224 = por %p222, %p223
      %p225 = scmp.ne.s32.totalorder %s214, %s215
      %p226 = scmp.eq.s32.totalorder %s34, 0
      %p227 = por %p225, %p226
      %p228 = scmp.ne.s32.totalorder %s214, %s215
      %p229 = scmp.eq.s32.totalorder %s35, 1
      %p230 = por %p228, %p229
      %p232 = scmp.ne.s32.totalorder %s215, %s231
      %p233 = scmp.eq.s32.totalorder %s35, 0
      %p234 = por %p232, %p233
      %s235 = ssub.s32 %s29, %s36
      %p236 = scmp.eq.s32.totalorder %s235, 0
      %s238 = sadd.s32 %s237, 1
      %s239 = scalar_select %p236, %s237, %s238
      %p242 = pneg %p236
      %p243 = scmp.eq.s32.totalorder %s29, 1
      %p244 = por %p242, %p243
      %p245 = scmp.ne.s32.totalorder %s237, %s240
      %p246 = scmp.eq.s32.totalorder %s29, 0
      %p247 = por %p245, %p246
      %p248 = scmp.ne.s32.totalorder %s237, %s240
      %p249 = scmp.eq.s32.totalorder %s34, 1
      %p250 = por %p248, %p249
      %p251 = scmp.ne.s32.totalorder %s240, %s241
      %p252 = scmp.eq.s32.totalorder %s34, 0
      %p253 = por %p251, %p252
      %p254 = scmp.ne.s32.totalorder %s240, %s241
      %p255 = scmp.eq.s32.totalorder %s35, 1
      %p256 = por %p254, %p255
      %p258 = scmp.ne.s32.totalorder %s241, %s257
      %p259 = scmp.eq.s32.totalorder %s35, 0
      %p260 = por %p258, %p259
      %s261 = ssub.s32 %s29, %s36
      %p262 = scmp.eq.s32.totalorder %s261, 0
      %s264 = sadd.s32 %s263, 1
      %s265 = scalar_select %p262, %s263, %s264
      %p268 = pneg %p262
      %p269 = scmp.eq.s32.totalorder %s29, 1
      %p270 = por %p268, %p269
      %p271 = scmp.ne.s32.totalorder %s263, %s266
      %p272 = scmp.eq.s32.totalorder %s29, 0
      %p273 = por %p271, %p272
      %p274 = scmp.ne.s32.totalorder %s263, %s266
      %p275 = scmp.eq.s32.totalorder %s34, 1
      %p276 = por %p274, %p275
      %p277 = scmp.ne.s32.totalorder %s266, %s267
      %p278 = scmp.eq.s32.totalorder %s34, 0
      %p279 = por %p277, %p278
      %p280 = scmp.ne.s32.totalorder %s266, %s267
      %p281 = scmp.eq.s32.totalorder %s35, 1
      %p282 = por %p280, %p281
      %p284 = scmp.ne.s32.totalorder %s267, %s283
      %p285 = scmp.eq.s32.totalorder %s35, 0
      %p286 = por %p284, %p285
      %s287 = ssub.s32 %s29, %s36
      %p288 = scmp.eq.s32.totalorder %s287, 0
      %s290 = sadd.s32 %s289, 1
      %s291 = scalar_select %p288, %s289, %s290
      %p294 = pneg %p288
      %p295 = scmp.eq.s32.totalorder %s29, 1
      %p296 = por %p294, %p295
      %p297 = scmp.ne.s32.totalorder %s289, %s292
      %p298 = scmp.eq.s32.totalorder %s29, 0
      %p299 = por %p297, %p298
      %p300 = scmp.ne.s32.totalorder %s289, %s292
      %p301 = scmp.eq.s32.totalorder %s34, 1
      %p302 = por %p300, %p301
      %p303 = scmp.ne.s32.totalorder %s292, %s293
      %p304 = scmp.eq.s32.totalorder %s34, 0
      %p305 = por %p303, %p304
      %p306 = scmp.ne.s32.totalorder %s292, %s293
      %p307 = scmp.eq.s32.totalorder %s35, 1
      %p308 = por %p306, %p307
      %p310 = scmp.ne.s32.totalorder %s293, %s309
      %p311 = scmp.eq.s32.totalorder %s35, 0
      %p312 = por %p310, %p311
      %s313 = ssub.s32 %s29, %s36
      %p314 = scmp.eq.s32.totalorder %s313, 0
      %s316 = sadd.s32 %s315, 1
      %s317 = scalar_select %p314, %s315, %s316
      %p320 = pneg %p314
      %p321 = scmp.eq.s32.totalorder %s29, 1
      %p322 = por %p320, %p321
      %p323 = scmp.ne.s32.totalorder %s315, %s318
      %p324 = scmp.eq.s32.totalorder %s29, 0
      %p325 = por %p323, %p324
      %p326 = scmp.ne.s32.totalorder %s315, %s318
      %p327 = scmp.eq.s32.totalorder %s34, 1
      %p328 = por %p326, %p327
      %p329 = scmp.ne.s32.totalorder %s318, %s319
      %p330 = scmp.eq.s32.totalorder %s34, 0
      %p331 = por %p329, %p330
      %p332 = scmp.ne.s32.totalorder %s318, %s319
      %p333 = scmp.eq.s32.totalorder %s35, 1
      %p334 = por %p332, %p333
      %p336 = scmp.ne.s32.totalorder %s319, %s335
      %p337 = scmp.eq.s32.totalorder %s35, 0
      %p338 = por %p336, %p337
      %s340 = sadd.s32 %s339, 1
      %p343 = scmp.eq.s32.totalorder %s29, 1
      %p344 = scmp.ne.s32.totalorder %s339, %s341
      %p345 = scmp.eq.s32.totalorder %s29, 0
      %p346 = por %p344, %p345
      %p347 = scmp.ne.s32.totalorder %s339, %s341
      %p348 = scmp.eq.s32.totalorder %s34, 1
      %p349 = por %p347, %p348
      %p350 = scmp.ne.s32.totalorder %s341, %s342
      %p351 = scmp.eq.s32.totalorder %s34, 0
      %p352 = por %p350, %p351
      %p353 = scmp.ne.s32.totalorder %s341, %s342
      %p354 = scmp.eq.s32.totalorder %s35, 1
      %p355 = por %p353, %p354
      %p357 = scmp.ne.s32.totalorder %s342, %s356
      %p358 = scmp.eq.s32.totalorder %s35, 0
      %p359 = por %p357, %p358
      %p360 = scmp.le.s32.totalorder 1, %s29
      %p361 = scmp.lt.s32.totalorder %s29, 3
      %p362 = pnand %p360, %p361
      %p363 = pneg %p362
      // Predicated region
      $region9: #{tpu_custom_call.1} parent=5 // pred_check
        _
      $region10: #{tpu_custom_call.1} parent=5 // pred_check_branch
        %365 = sbr.rel (%p362) target = $region12
      $region11: #{tpu_custom_call.1} parent=5 // pred_region
        %s366 = ssub.s32 %s29, 1
        // Predicated region
        $region13: #{tpu_custom_call.1} parent=11 // pred_check
          %p367 = pneg %p50
        $region14: #{tpu_custom_call.1} parent=11 // pred_check_branch
          %369 = sbr.rel (%p367) target = $region16
        $region15: #{tpu_custom_call.1} parent=11 // pred_region
          _
        $region16: #{tpu_custom_call.1} parent=11 // pred_fallthru
          _
        // Predicated region
        $region17: #{tpu_custom_call.1} parent=11 // pred_check
          %p370 = pneg %p71
        $region18: #{tpu_custom_call.1} parent=11 // pred_check_branch
          %372 = sbr.rel (%p370) target = $region20
        $region19: #{tpu_custom_call.1} parent=11 // pred_region
          %s374 = ssub.s32 256, 256
          %375 = vsyncadd [#allocation3], %s374
          %s376 = sshll.u32 [#allocation2], 4
          %s377 = int_to_ptr.vmem [resolvable:$true] %s376
          %382 = dma.hbm_to_vmem [thread:$0]  %s1, 256, %s377, [#allocation3], 128, 128, 8
        $region20: #{tpu_custom_call.1} parent=11 // pred_fallthru
          _
      $region12: #{tpu_custom_call.1} parent=5 // pred_fallthru
        _
      %p383 = scmp.lt.s32.totalorder %s29, 2
      // Predicated region
      $region21: #{tpu_custom_call.1} parent=5 // pred_check
        %p384 = pneg %p383
      $region22: #{tpu_custom_call.1} parent=5 // pred_check_branch
        %386 = sbr.rel (%p384) target = $region24
      $region23: #{tpu_custom_call.1} parent=5 // pred_region
        // Predicated region
        $region25: #{tpu_custom_call.1} parent=23 // pred_check
          %p387 = pneg %p91
        $region26: #{tpu_custom_call.1} parent=23 // pred_check_branch
          %389 = sbr.rel (%p387) target = $region28
        $region27: #{tpu_custom_call.1} parent=23 // pred_region
          %s390 = sand.u32 %s29, 1
          %s391 = scalar_lea.sflag [#allocation6], %s390
          %s392 = sand.u32 %s81, 1
          %s393 = smul.addr %s392, 256
          %s394 = scalar_lea.vmem [#allocation5], %s393
          %s396 = ssub.s32 4096, 4096
          %397 = vsyncadd %s391, %s396
          %s398 = smul.addr %s29, 64
          %s399 = smul.addr %s398, 64
          %s400 = scalar_lea.hbm %s2, %s399
          %s401 = sshll.u32 %s394, 4
          %s402 = int_to_ptr.vmem [resolvable:$true] %s401
          %407 = dma.hbm_to_vmem [thread:$0]  %s400, 4096, %s402, %s391, 256, 256, 16
        $region28: #{tpu_custom_call.1} parent=23 // pred_fallthru
          _
        // Predicated region
        $region29: #{tpu_custom_call.1} parent=23 // pred_check
          %p408 = pneg %p117
        $region30: #{tpu_custom_call.1} parent=23 // pred_check_branch
          %410 = sbr.rel (%p408) target = $region32
        $region31: #{tpu_custom_call.1} parent=23 // pred_region
          %p411 = scmp.lt.s32.totalorder %s29, 1
          %s412 = scalar_select %p411, %s29, 1
          %s413 = smul.addr %s412, 4
          %s414 = scalar_lea.vmem %s3, %s413
        $region32: #{tpu_custom_call.1} parent=23 // pred_fallthru
          _
        // Predicated region
        $region33: #{tpu_custom_call.1} parent=23 // pred_check
          %p415 = pneg %p143
        $region34: #{tpu_custom_call.1} parent=23 // pred_check_branch
          %417 = sbr.rel (%p415) target = $region36
        $region35: #{tpu_custom_call.1} parent=23 // pred_region
          %p418 = scmp.lt.s32.totalorder %s29, 1
          %s419 = scalar_select %p418, %s29, 1
          %s420 = smul.addr %s419, 4
          %s421 = scalar_lea.vmem %s4, %s420
        $region36: #{tpu_custom_call.1} parent=23 // pred_fallthru
          _
        // Predicated region
        $region37: #{tpu_custom_call.1} parent=23 // pred_check
          %p422 = pneg %p169
        $region38: #{tpu_custom_call.1} parent=23 // pred_check_branch
          %424 = sbr.rel (%p422) target = $region40
        $region39: #{tpu_custom_call.1} parent=23 // pred_region
          %p425 = scmp.lt.s32.totalorder %s29, 1
          %s426 = scalar_select %p425, %s29, 1
          %s427 = smul.addr %s426, 4
          %s428 = scalar_lea.vmem %s5, %s427
        $region40: #{tpu_custom_call.1} parent=23 // pred_fallthru
          _
        // Predicated region
        $region41: #{tpu_custom_call.1} parent=23 // pred_check
          %p429 = pneg %p195
        $region42: #{tpu_custom_call.1} parent=23 // pred_check_branch
          %431 = sbr.rel (%p429) target = $region44
        $region43: #{tpu_custom_call.1} parent=23 // pred_region
          %p432 = scmp.lt.s32.totalorder %s29, 1
          %s433 = scalar_select %p432, %s29, 1
          %s434 = scalar_lea.vmem %s6, %s433
        $region44: #{tpu_custom_call.1} parent=23 // pred_fallthru
          _
        // Predicated region
        $region45: #{tpu_custom_call.1} parent=23 // pred_check
          %p435 = pneg %p221
        $region46: #{tpu_custom_call.1} parent=23 // pred_check_branch
          %437 = sbr.rel (%p435) target = $region48
        $region47: #{tpu_custom_call.1} parent=23 // pred_region
          %p438 = scmp.lt.s32.totalorder %s29, 1
          %s439 = scalar_select %p438, %s29, 1
          %s440 = scalar_lea.vmem %s7, %s439
        $region48: #{tpu_custom_call.1} parent=23 // pred_fallthru
          _
        // Predicated region
        $region49: #{tpu_custom_call.1} parent=23 // pred_check
          %p441 = pneg %p247
        $region50: #{tpu_custom_call.1} parent=23 // pred_check_branch
          %443 = sbr.rel (%p441) target = $region52
        $region51: #{tpu_custom_call.1} parent=23 // pred_region
          %s444 = sand.u32 %s29, 1
          %s445 = scalar_lea.sflag [#allocation6], %s444
          %s446 = sand.u32 %s237, 1
          %s447 = smul.addr %s446, 64
          %s448 = scalar_lea.vmem [#allocation7], %s447
          %s450 = ssub.s32 1024, 1024
          %451 = vsyncadd %s445, %s450
          %s452 = smul.addr %s29, 16
          %s453 = smul.addr %s452, 64
          %s454 = scalar_lea.hbm %s8, %s453
          %s455 = sshll.u32 %s448, 4
          %s456 = int_to_ptr.vmem [resolvable:$true] %s455
          %461 = dma.hbm_to_vmem [thread:$0]  %s454, 1024, %s456, %s445, 64, 64, 4
        $region52: #{tpu_custom_call.1} parent=23 // pred_fallthru
          _
        // Predicated region
        $region53: #{tpu_custom_call.1} parent=23 // pred_check
          %p462 = pneg %p273
        $region54: #{tpu_custom_call.1} parent=23 // pred_check_branch
          %464 = sbr.rel (%p462) target = $region56
        $region55: #{tpu_custom_call.1} parent=23 // pred_region
          %s465 = sand.u32 %s29, 1
          %s466 = scalar_lea.sflag [#allocation9], %s465
          %s467 = sand.u32 %s263, 1
          %s468 = scalar_lea.vmem [#allocation8], %s467
          %s470 = ssub.s32 16, 16
          %471 = vsyncadd %s466, %s470
          %s472 = smul.addr %s29, 16
          %s473 = scalar_lea.hbm %s9, %s472
          %s475 = sshll.u32 %s468, 4
          %s476 = int_to_ptr.vmem [resolvable:$true] %s475
          %478 = dma.hbm_to_vmem [thread:$0]  %s473, 16, %s476, %s466
        $region56: #{tpu_custom_call.1} parent=23 // pred_fallthru
          _
        // Predicated region
        $region57: #{tpu_custom_call.1} parent=23 // pred_check
          %p479 = pneg %p299
        $region58: #{tpu_custom_call.1} parent=23 // pred_check_branch
          %481 = sbr.rel (%p479) target = $region60
        $region59: #{tpu_custom_call.1} parent=23 // pred_region
          %s482 = sand.u32 %s29, 1
          %s483 = scalar_lea.sflag [#allocation9], %s482
          %s484 = sand.u32 %s289, 1
          %s485 = scalar_lea.vmem [#allocation10], %s484
          %s487 = ssub.s32 16, 16
          %488 = vsyncadd %s483, %s487
          %s489 = smul.addr %s29, 16
          %s490 = scalar_lea.hbm %s10, %s489
          %s492 = sshll.u32 %s485, 4
          %s493 = int_to_ptr.vmem [resolvable:$true] %s492
          %495 = dma.hbm_to_vmem [thread:$0]  %s490, 16, %s493, %s483
        $region60: #{tpu_custom_call.1} parent=23 // pred_fallthru
          _
        // Predicated region
        $region61: #{tpu_custom_call.1} parent=23 // pred_check
          %p496 = pneg %p325
        $region62: #{tpu_custom_call.1} parent=23 // pred_check_branch
          %498 = sbr.rel (%p496) target = $region64
        $region63: #{tpu_custom_call.1} parent=23 // pred_region
          %s499 = sand.u32 %s315, 1
          %s500 = scalar_lea.sflag [#allocation12], %s499
          %s501 = sand.u32 %s315, 1
          %s502 = scalar_lea.vmem [#allocation11], %s501
          %s504 = ssub.s32 16, 16
          %505 = vsyncadd %s500, %s504
          %s506 = smul.addr %s29, 16
          %s507 = scalar_lea.hbm %s11, %s506
          %s509 = sshll.u32 %s502, 4
          %s510 = int_to_ptr.vmem [resolvable:$true] %s509
          %512 = dma.hbm_to_vmem [thread:$0]  %s507, 16, %s510, %s500
        $region64: #{tpu_custom_call.1} parent=23 // pred_fallthru
          _
      $region24: #{tpu_custom_call.1} parent=5 // pred_fallthru
        _
      %p513 = scmp.le.s32.totalorder 1, %s29
      %p514 = scmp.lt.s32.totalorder %s29, 3
      %p515 = pnand %p513, %p514
      %p516 = pneg %p515
      // Predicated region
      $region65: #{tpu_custom_call.1} parent=5 // pred_check
        _
      $region66: #{tpu_custom_call.1} parent=5 // pred_check_branch
        %518 = sbr.rel (%p515) target = $region68
      $region67: #{tpu_custom_call.1} parent=5 // pred_region
        %s519 = ssub.s32 %s29, 1
        // Predicated region
        $region69: #{tpu_custom_call.1} parent=67 // pred_check
          %p520 = pneg %p71
        $region70: #{tpu_custom_call.1} parent=67 // pred_check_branch
          %522 = sbr.rel (%p520) target = $region72
        $region71: #{tpu_custom_call.1} parent=67 // pred_region
          %523 = dma.done [#allocation3], 256
        $region72: #{tpu_custom_call.1} parent=67 // pred_fallthru
          _
        %s524 = sand.u32 %s34, 1
        %s525 = scalar_lea.sflag [#allocation6], %s524
        %s526 = sand.u32 %s84, 1
        %s527 = smul.addr %s526, 256
        %s528 = scalar_lea.vmem [#allocation5], %s527
        // Predicated region
        $region73: #{tpu_custom_call.1} parent=67 // pred_check
          %p529 = pneg %p97
        $region74: #{tpu_custom_call.1} parent=67 // pred_check_branch
          %531 = sbr.rel (%p529) target = $region76
        $region75: #{tpu_custom_call.1} parent=67 // pred_region
          %532 = dma.done %s525, 4096
        $region76: #{tpu_custom_call.1} parent=67 // pred_fallthru
          _
        %s533 = sand.u32 %s34, 1
        %s534 = scalar_lea.sflag [#allocation6], %s533
        %s535 = sand.u32 %s240, 1
        %s536 = smul.addr %s535, 64
        %s537 = scalar_lea.vmem [#allocation7], %s536
        // Predicated region
        $region77: #{tpu_custom_call.1} parent=67 // pred_check
          %p538 = pneg %p253
        $region78: #{tpu_custom_call.1} parent=67 // pred_check_branch
          %540 = sbr.rel (%p538) target = $region80
        $region79: #{tpu_custom_call.1} parent=67 // pred_region
          %541 = dma.done %s534, 1024
        $region80: #{tpu_custom_call.1} parent=67 // pred_fallthru
          _
        %s542 = sand.u32 %s34, 1
        %s543 = scalar_lea.sflag [#allocation9], %s542
        %s544 = sand.u32 %s266, 1
        %s545 = scalar_lea.vmem [#allocation8], %s544
        // Predicated region
        $region81: #{tpu_custom_call.1} parent=67 // pred_check
          %p546 = pneg %p279
        $region82: #{tpu_custom_call.1} parent=67 // pred_check_branch
          %548 = sbr.rel (%p546) target = $region84
        $region83: #{tpu_custom_call.1} parent=67 // pred_region
          %549 = dma.done %s543, 16
        $region84: #{tpu_custom_call.1} parent=67 // pred_fallthru
          _
        %s550 = sand.u32 %s34, 1
        %s551 = scalar_lea.sflag [#allocation9], %s550
        %s552 = sand.u32 %s292, 1
        %s553 = scalar_lea.vmem [#allocation10], %s552
        // Predicated region
        $region85: #{tpu_custom_call.1} parent=67 // pred_check
          %p554 = pneg %p305
        $region86: #{tpu_custom_call.1} parent=67 // pred_check_branch
          %556 = sbr.rel (%p554) target = $region88
        $region87: #{tpu_custom_call.1} parent=67 // pred_region
          %557 = dma.done %s551, 16
        $region88: #{tpu_custom_call.1} parent=67 // pred_fallthru
          _
        %s558 = sand.u32 %s318, 1
        %s559 = scalar_lea.sflag [#allocation12], %s558
        %s560 = sand.u32 %s318, 1
        %s561 = scalar_lea.vmem [#allocation11], %s560
        // Predicated region
        $region89: #{tpu_custom_call.1} parent=67 // pred_check
          %p562 = pneg %p331
        $region90: #{tpu_custom_call.1} parent=67 // pred_check_branch
          %564 = sbr.rel (%p562) target = $region92
        $region91: #{tpu_custom_call.1} parent=67 // pred_region
          %565 = dma.done %s559, 16
        $region92: #{tpu_custom_call.1} parent=67 // pred_fallthru
          _
        %p566 = pneg %p50
        %p567 = pneg %p47
        %p568 = pneg %p71
        %p569 = pneg %p68
        %s570 = sand.u32 %s34, 1
        %s571 = scalar_lea.sflag [#allocation6], %s570
        %s572 = sand.u32 %s84, 1
        %s573 = smul.addr %s572, 256
        %s574 = scalar_lea.vmem [#allocation5], %s573
        %p575 = pneg %p97
        %p576 = pneg %p94
        %p577 = scmp.lt.s32.totalorder %s34, 1
        %s578 = scalar_select %p577, %s34, 1
        %s579 = smul.addr %s578, 4
        %s580 = scalar_lea.vmem %s3, %s579
        %p581 = pneg %p123
        %p582 = pneg %p120
        %p583 = scmp.lt.s32.totalorder %s34, 1
        %s584 = scalar_select %p583, %s34, 1
        %s585 = smul.addr %s584, 4
        %s586 = scalar_lea.vmem %s4, %s585
        %p587 = pneg %p149
        %p588 = pneg %p146
        %p589 = scmp.lt.s32.totalorder %s34, 1
        %s590 = scalar_select %p589, %s34, 1
        %s591 = smul.addr %s590, 4
        %s592 = scalar_lea.vmem %s5, %s591
        %p593 = pneg %p175
        %p594 = pneg %p172
        %p595 = scmp.lt.s32.totalorder %s34, 1
        %s596 = scalar_select %p595, %s34, 1
        %s597 = scalar_lea.vmem %s6, %s596
        %p598 = pneg %p201
        %p599 = pneg %p198
        %p600 = scmp.lt.s32.totalorder %s34, 1
        %s601 = scalar_select %p600, %s34, 1
        %s602 = scalar_lea.vmem %s7, %s601
        %p603 = pneg %p227
        %p604 = pneg %p224
        %s605 = sand.u32 %s34, 1
        %s606 = scalar_lea.sflag [#allocation6], %s605
        %s607 = sand.u32 %s240, 1
        %s608 = smul.addr %s607, 64
        %s609 = scalar_lea.vmem [#allocation7], %s608
        %p610 = pneg %p253
        %p611 = pneg %p250
        %s612 = sand.u32 %s34, 1
        %s613 = scalar_lea.sflag [#allocation9], %s612
        %s614 = sand.u32 %s266, 1
        %s615 = scalar_lea.vmem [#allocation8], %s614
        %p616 = pneg %p279
        %p617 = pneg %p276
        %s618 = sand.u32 %s34, 1
        %s619 = scalar_lea.sflag [#allocation9], %s618
        %s620 = sand.u32 %s292, 1
        %s621 = scalar_lea.vmem [#allocation10], %s620
        %p622 = pneg %p305
        %p623 = pneg %p302
        %s624 = sand.u32 %s318, 1
        %s625 = scalar_lea.sflag [#allocation12], %s624
        %s626 = sand.u32 %s318, 1
        %s627 = scalar_lea.vmem [#allocation11], %s626
        %p628 = pneg %p331
        %p629 = pneg %p328
        %p630 = pneg %p352
        %p631 = pneg %p349
        %p632 = scmp.lt.s32.totalorder %s34, 1
        %s633 = scalar_select %p632, %s34, 1
        %s634 = smul.addr %s633, 4
        %s635 = scalar_lea.vmem %s3, %s634
        %p636 = scmp.lt.s32.totalorder %s34, 1
        %s637 = scalar_select %p636, %s34, 1
        %s638 = smul.addr %s637, 4
        %s639 = scalar_lea.vmem %s4, %s638
        %p640 = scmp.lt.s32.totalorder %s34, 1
        %s641 = scalar_select %p640, %s34, 1
        %s642 = smul.addr %s641, 4
        %s643 = scalar_lea.vmem %s5, %s642
        %p644 = scmp.lt.s32.totalorder %s34, 1
        %s645 = scalar_select %p644, %s34, 1
        %s646 = scalar_lea.vmem %s6, %s645
        %p647 = scmp.lt.s32.totalorder %s34, 1
        %s648 = scalar_select %p647, %s34, 1
        %s649 = scalar_lea.vmem %s7, %s648
        %p651 = scmp.eq.s32.totalorder %s34, 0
        // Predicated region
        $region93: #{tpu_custom_call.1} parent=67 // pred_check
          %p652 = pneg %p651
        $region94: #{tpu_custom_call.1} parent=67 // pred_check_branch
          %654 = sbr.rel (%p652) target = $region96
        $region95: #{tpu_custom_call.1} parent=67 // pred_region
          %v655 = vld [vmem:[#allocation2] sm:$0xff]
          %v656 = vld [vmem:[#allocation2 + $0x8] sm:$0xff]
          %657 = vst [vmem:[#allocation13] sm:$0xff] %v655
          %658 = vst [vmem:[#allocation13 + $0x8] sm:$0xff] %v656
        $region96: #{tpu_custom_call.1} parent=67 // pred_fallthru
          _
        %v659 = vld [vmem:[#allocation13] sm:$0xff]
        %v660 = vld [vmem:[#allocation13 + $0x8] sm:$0xff]
        %v661 = vld [vmem:[%s528] sm:$0xff]
        %v662 = vld [vmem:[%s528 + $0x8] sm:$0xff]
        %v663 = vld [vmem:[%s528 + $0x10] sm:$0xff]
        %v664 = vld [vmem:[%s528 + $0x18] sm:$0xff]
        %v665 = vld [vmem:[%s528 + $0x20] sm:$0xff]
        %v666 = vld [vmem:[%s528 + $0x28] sm:$0xff]
        %v667 = vld [vmem:[%s528 + $0x30] sm:$0xff]
        %v668 = vld [vmem:[%s528 + $0x38] sm:$0xff]
        %v669 = vld [vmem:[%s528 + $0x40] sm:$0xff]
        %v670 = vld [vmem:[%s528 + $0x48] sm:$0xff]
        %v671 = vld [vmem:[%s528 + $0x50] sm:$0xff]
        %v672 = vld [vmem:[%s528 + $0x58] sm:$0xff]
        %v673 = vld [vmem:[%s528 + $0x60] sm:$0xff]
        %v674 = vld [vmem:[%s528 + $0x68] sm:$0xff]
        %v675 = vld [vmem:[%s528 + $0x70] sm:$0xff]
        %v676 = vld [vmem:[%s528 + $0x78] sm:$0xff]
        %v677 = vld [vmem:[%s528 + $0x80] sm:$0xff]
        %v678 = vld [vmem:[%s528 + $0x88] sm:$0xff]
        %v679 = vld [vmem:[%s528 + $0x90] sm:$0xff]
        %v680 = vld [vmem:[%s528 + $0x98] sm:$0xff]
        %v681 = vld [vmem:[%s528 + $0xa0] sm:$0xff]
        %v682 = vld [vmem:[%s528 + $0xa8] sm:$0xff]
        %v683 = vld [vmem:[%s528 + $0xb0] sm:$0xff]
        %v684 = vld [vmem:[%s528 + $0xb8] sm:$0xff]
        %v685 = vld [vmem:[%s528 + $0xc0] sm:$0xff]
        %v686 = vld [vmem:[%s528 + $0xc8] sm:$0xff]
        %v687 = vld [vmem:[%s528 + $0xd0] sm:$0xff]
        %v688 = vld [vmem:[%s528 + $0xd8] sm:$0xff]
        %v689 = vld [vmem:[%s528 + $0xe0] sm:$0xff]
        %v690 = vld [vmem:[%s528 + $0xe8] sm:$0xff]
        %v691 = vld [vmem:[%s528 + $0xf0] sm:$0xff]
        %v692 = vld [vmem:[%s528 + $0xf8] sm:$0xff]
        %v693 = vld [vmem:[%s635] sm:$0xf]
        %v694 = vpack.c.bf16 %v660, %v659
        %v696 = vlaneseq
        %v697 = vshrl.u32 %v696, 7
        %v698 = vsub.s32 0, %v697
        %v699 = vrot.slane %v693, %v698
        %v700 = vlaneseq
        %v701 = vshrl.u32 %v700, 7
        %v702 = vsub.s32 1, %v701
        %v703 = vrot.slane %v693, %v702
        %v704 = vlaneseq
        %v705 = vshrl.u32 %v704, 7
        %v706 = vsub.s32 2, %v705
        %v707 = vrot.slane %v693, %v706
        %v708 = vlaneseq
        %v709 = vshrl.u32 %v708, 7
        %v710 = vsub.s32 3, %v709
        %v711 = vrot.slane %v693, %v710
        %v748 = vunpack.c.l.b16 %v661
        %v749 = vunpack.c.h.b16 %v661
        %v750 = vunpack.c.l.b16 %v662
        %v751 = vunpack.c.h.b16 %v662
        %v752 = vunpack.c.l.b16 %v663
        %v753 = vunpack.c.h.b16 %v663
        %v754 = vunpack.c.l.b16 %v664
        %v755 = vunpack.c.h.b16 %v664
        %v756 = vunpack.c.l.b16 %v665
        %v757 = vunpack.c.h.b16 %v665
        %v758 = vunpack.c.l.b16 %v666
        %v759 = vunpack.c.h.b16 %v666
        %v760 = vunpack.c.l.b16 %v667
        %v761 = vunpack.c.h.b16 %v667
        %v762 = vunpack.c.l.b16 %v668
        %v763 = vunpack.c.h.b16 %v668
        %v764 = vunpack.c.l.b16 %v669
        %v765 = vunpack.c.h.b16 %v669
        %v766 = vunpack.c.l.b16 %v670
        %v767 = vunpack.c.h.b16 %v670
        %v768 = vunpack.c.l.b16 %v671
        %v769 = vunpack.c.h.b16 %v671
        %v770 = vunpack.c.l.b16 %v672
        %v771 = vunpack.c.h.b16 %v672
        %v772 = vunpack.c.l.b16 %v673
        %v773 = vunpack.c.h.b16 %v673
        %v774 = vunpack.c.l.b16 %v674
        %v775 = vunpack.c.h.b16 %v674
        %v776 = vunpack.c.l.b16 %v675
        %v777 = vunpack.c.h.b16 %v675
        %v778 = vunpack.c.l.b16 %v676
        %v779 = vunpack.c.h.b16 %v676
        %v780 = vunpack.c.l.b16 %v677
        %v781 = vunpack.c.h.b16 %v677
        %v782 = vunpack.c.l.b16 %v678
        %v783 = vunpack.c.h.b16 %v678
        %v784 = vunpack.c.l.b16 %v679
        %v785 = vunpack.c.h.b16 %v679
        %v786 = vunpack.c.l.b16 %v680
        %v787 = vunpack.c.h.b16 %v680
        %v788 = vunpack.c.l.b16 %v681
        %v789 = vunpack.c.h.b16 %v681
        %v790 = vunpack.c.l.b16 %v682
        %v791 = vunpack.c.h.b16 %v682
        %v792 = vunpack.c.l.b16 %v683
        %v793 = vunpack.c.h.b16 %v683
        %v794 = vunpack.c.l.b16 %v684
        %v795 = vunpack.c.h.b16 %v684
        %v796 = vunpack.c.l.b16 %v685
        %v797 = vunpack.c.h.b16 %v685
        %v798 = vunpack.c.l.b16 %v686
        %v799 = vunpack.c.h.b16 %v686
        %v800 = vunpack.c.l.b16 %v687
        %v801 = vunpack.c.h.b16 %v687
        %v802 = vunpack.c.l.b16 %v688
        %v803 = vunpack.c.h.b16 %v688
        %v804 = vunpack.c.l.b16 %v689
        %v805 = vunpack.c.h.b16 %v689
        %v806 = vunpack.c.l.b16 %v690
        %v807 = vunpack.c.h.b16 %v690
        %v808 = vunpack.c.l.b16 %v691
        %v809 = vunpack.c.h.b16 %v691
        %v810 = vunpack.c.l.b16 %v692
        %v811 = vunpack.c.h.b16 %v692
        %v812 = vpack.c.b16 %v752, %v748
        %v813 = vpack.c.b16 %v753, %v749
        %v814 = vpack.c.b16 %v754, %v750
        %v815 = vpack.c.b16 %v755, %v751
        %v816 = vpack.c.b16 %v760, %v756
        %v817 = vpack.c.b16 %v761, %v757
        %v818 = vpack.c.b16 %v762, %v758
        %v819 = vpack.c.b16 %v763, %v759
        %v820 = vpack.c.b16 %v768, %v764
        %v821 = vpack.c.b16 %v769, %v765
        %v822 = vpack.c.b16 %v770, %v766
        %v823 = vpack.c.b16 %v771, %v767
        %v824 = vpack.c.b16 %v776, %v772
        %v825 = vpack.c.b16 %v777, %v773
        %v826 = vpack.c.b16 %v778, %v774
        %v827 = vpack.c.b16 %v779, %v775
        %v828 = vpack.c.b16 %v784, %v780
        %v829 = vpack.c.b16 %v785, %v781
        %v830 = vpack.c.b16 %v786, %v782
        %v831 = vpack.c.b16 %v787, %v783
        %v832 = vpack.c.b16 %v792, %v788
        %v833 = vpack.c.b16 %v793, %v789
        %v834 = vpack.c.b16 %v794, %v790
        %v835 = vpack.c.b16 %v795, %v791
        %v836 = vpack.c.b16 %v800, %v796
        %v837 = vpack.c.b16 %v801, %v797
        %v838 = vpack.c.b16 %v802, %v798
        %v839 = vpack.c.b16 %v803, %v799
        %v840 = vpack.c.b16 %v808, %v804
        %v841 = vpack.c.b16 %v809, %v805
        %v842 = vpack.c.b16 %v810, %v806
        %v843 = vpack.c.b16 %v811, %v807
        %876 = vmatprep.subr.bf16.mxu0 %v813
        %877 = vmatpush1.bf16.msra.mxu0 %v812
        %878 = vmatprep.subr.bf16.mxu0 %v817
        %879 = vmatpush1.bf16.msra.mxu0 %v816
        %880 = vmatprep.subr.bf16.mxu0 %v821
        %881 = vmatpush1.bf16.msra.mxu0 %v820
        %882 = vmatprep.subr.bf16.mxu0 %v825
        %883 = vmatpush1.bf16.msra.mxu0 %v824
        %884 = vmatprep.subr.bf16.mxu0 %v829
        %885 = vmatpush1.bf16.msra.mxu0 %v828
        %886 = vmatprep.subr.bf16.mxu0 %v833
        %887 = vmatpush1.bf16.msra.mxu0 %v832
        %888 = vmatprep.subr.bf16.mxu0 %v837
        %889 = vmatpush1.bf16.msra.mxu0 %v836
        %890 = vmatprep.subr.bf16.mxu0 %v841
        %891 = vmatpush1.bf16.msra.mxu0 %v840
        %892 = vmatprep.subr.bf16.mxu0 0
        %893 = vmatpush1.bf16.msra.mxu0 0
        %894 = vmatprep.subr.bf16.mxu0 0
        %895 = vmatpush1.bf16.msra.mxu0 0
        %896 = vmatprep.subr.bf16.mxu0 0
        %897 = vmatpush1.bf16.msra.mxu0 0
        %898 = vmatprep.subr.bf16.mxu0 0
        %899 = vmatpush1.bf16.msra.mxu0 0
        %900 = vmatprep.subr.bf16.mxu0 0
        %901 = vmatpush1.bf16.msra.mxu0 0
        %902 = vmatprep.subr.bf16.mxu0 0
        %903 = vmatpush1.bf16.msra.mxu0 0
        %904 = vmatprep.subr.bf16.mxu0 0
        %905 = vmatpush1.bf16.msra.mxu0 0
        %906 = vmatprep.subr.bf16.mxu0 0
        %907 = vmatpush1.bf16.msra.mxu0 0
        %908 = vmatprep.mubr.bf16.mxu0 0
        %909 = vmatmul.mubr.bf16.gmra.mrb[0].mxu0 %v694
        %v910 = vpop.f32.mrb[0].mxu0
        %v911 = vadd.f32 %v699, %v910
        %v912 = vpop.f32.mrb[0].mxu0
        %v913 = vadd.f32 %v703, %v912
        %v914 = vpop.f32.mrb[0].mxu0
        %v915 = vadd.f32 %v699, %v914
        %v916 = vpop.f32.mrb[0].mxu0
        %v917 = vadd.f32 %v703, %v916
        %918 = vdwg.mxu0
        %919 = vmatprep.subr.bf16.mxu0 %v815
        %920 = vmatpush1.bf16.msra.mxu0 %v814
        %921 = vmatprep.subr.bf16.mxu0 %v819
        %922 = vmatpush1.bf16.msra.mxu0 %v818
        %923 = vmatprep.subr.bf16.mxu0 %v823
        %924 = vmatpush1.bf16.msra.mxu0 %v822
        %925 = vmatprep.subr.bf16.mxu0 %v827
        %926 = vmatpush1.bf16.msra.mxu0 %v826
        %927 = vmatprep.subr.bf16.mxu0 %v831
        %928 = vmatpush1.bf16.msra.mxu0 %v830
        %929 = vmatprep.subr.bf16.mxu0 %v835
        %930 = vmatpush1.bf16.msra.mxu0 %v834
        %931 = vmatprep.subr.bf16.mxu0 %v839
        %932 = vmatpush1.bf16.msra.mxu0 %v838
        %933 = vmatprep.subr.bf16.mxu0 %v843
        %934 = vmatpush1.bf16.msra.mxu0 %v842
        %935 = vmatprep.subr.bf16.mxu0 0
        %936 = vmatpush1.bf16.msra.mxu0 0
        %937 = vmatprep.subr.bf16.mxu0 0
        %938 = vmatpush1.bf16.msra.mxu0 0
        %939 = vmatprep.subr.bf16.mxu0 0
        %940 = vmatpush1.bf16.msra.mxu0 0
        %941 = vmatprep.subr.bf16.mxu0 0
        %942 = vmatpush1.bf16.msra.mxu0 0
        %943 = vmatprep.subr.bf16.mxu0 0
        %944 = vmatpush1.bf16.msra.mxu0 0
        %945 = vmatprep.subr.bf16.mxu0 0
        %946 = vmatpush1.bf16.msra.mxu0 0
        %947 = vmatprep.subr.bf16.mxu0 0
        %948 = vmatpush1.bf16.msra.mxu0 0
        %949 = vmatprep.subr.bf16.mxu0 0
        %950 = vmatpush1.bf16.msra.mxu0 0
        %951 = vmatprep.mubr.bf16.mxu0 0
        %952 = vmatmul.mubr.bf16.gmra.mrb[0].mxu0 %v694
        %v953 = vpop.f32.mrb[0].mxu0
        %v954 = vadd.f32 %v707, %v953
        %v955 = vpop.f32.mrb[0].mxu0
        %v956 = vadd.f32 %v711, %v955
        %v957 = vpop.f32.mrb[0].mxu0
        %v958 = vadd.f32 %v707, %v957
        %v959 = vpop.f32.mrb[0].mxu0
        %v960 = vadd.f32 %v711, %v959
        %961 = vdwg.mxu0
        %v962 = vld [vmem:[%s639] sm:$0xf]
        %v963 = vld [vmem:[%s643] sm:$0xf]
        %v964 = vadd.f32 %v911, %v915
        %v965 = vrot.slane %v964, 4
        %v966 = vadd.f32 %v964, %v965
        %v967 = vrot.slane %v966, 2
        %v968 = vadd.f32 %v966, %v967
        %v969 = vrot.slane %v968, 1
        %v970 = vadd.f32 %v968, %v969
        %v971 = vadd.f32 %v913, %v917
        %v972 = vrot.slane %v971, 4
        %v973 = vadd.f32 %v971, %v972
        %v974 = vrot.slane %v973, 2
        %v975 = vadd.f32 %v973, %v974
        %v976 = vrot.slane %v975, 1
        %v977 = vadd.f32 %v975, %v976
        %v978 = vadd.f32 %v954, %v958
        %v979 = vrot.slane %v978, 4
        %v980 = vadd.f32 %v978, %v979
        %v981 = vrot.slane %v980, 2
        %v982 = vadd.f32 %v980, %v981
        %v983 = vrot.slane %v982, 1
        %v984 = vadd.f32 %v982, %v983
        %v985 = vadd.f32 %v956, %v960
        %v986 = vrot.slane %v985, 4
        %v987 = vadd.f32 %v985, %v986
        %v988 = vrot.slane %v987, 2
        %v989 = vadd.f32 %v987, %v988
        %v990 = vrot.slane %v989, 1
        %v991 = vadd.f32 %v989, %v990
        %v992 = vmul.f32 %v911, %v911
        %v993 = vmul.f32 %v913, %v913
        %v994 = vmul.f32 %v954, %v954
        %v995 = vmul.f32 %v956, %v956
        %v996 = vmul.f32 %v915, %v915
        %v997 = vmul.f32 %v917, %v917
        %v998 = vmul.f32 %v958, %v958
        %v999 = vmul.f32 %v960, %v960
        %v1000 = vadd.f32 %v992, %v996
        %v1001 = vrot.slane %v1000, 4
        %v1002 = vadd.f32 %v1000, %v1001
        %v1003 = vrot.slane %v1002, 2
        %v1004 = vadd.f32 %v1002, %v1003
        %v1005 = vrot.slane %v1004, 1
        %v1006 = vadd.f32 %v1004, %v1005
        %v1007 = vadd.f32 %v993, %v997
        %v1008 = vrot.slane %v1007, 4
        %v1009 = vadd.f32 %v1007, %v1008
        %v1010 = vrot.slane %v1009, 2
        %v1011 = vadd.f32 %v1009, %v1010
        %v1012 = vrot.slane %v1011, 1
        %v1013 = vadd.f32 %v1011, %v1012
        %v1014 = vadd.f32 %v994, %v998
        %v1015 = vrot.slane %v1014, 4
        %v1016 = vadd.f32 %v1014, %v1015
        %v1017 = vrot.slane %v1016, 2
        %v1018 = vadd.f32 %v1016, %v1017
        %v1019 = vrot.slane %v1018, 1
        %v1020 = vadd.f32 %v1018, %v1019
        %v1021 = vadd.f32 %v995, %v999
        %v1022 = vrot.slane %v1021, 4
        %v1023 = vadd.f32 %v1021, %v1022
        %v1024 = vrot.slane %v1023, 2
        %v1025 = vadd.f32 %v1023, %v1024
        %v1026 = vrot.slane %v1025, 1
        %v1027 = vadd.f32 %v1025, %v1026
        %v1028 = vmul.f32 %v970, 0.0625
        %v1029 = vmul.f32 %v977, 0.0625
        %v1030 = vmul.f32 %v984, 0.0625
        %v1031 = vmul.f32 %v991, 0.0625
        %v1032 = vmul.f32 %v1006, 0.0625
        %v1033 = vmul.f32 %v1013, 0.0625
        %v1034 = vmul.f32 %v1020, 0.0625
        %v1035 = vmul.f32 %v1027, 0.0625
        %v1036 = vmul.f32 %v1028, %v1028
        %v1037 = vmul.f32 %v1029, %v1029
        %v1038 = vmul.f32 %v1030, %v1030
        %v1039 = vmul.f32 %v1031, %v1031
        %v1040 = vsub.f32 %v1032, %v1036
        %v1041 = vsub.f32 %v1033, %v1037
        %v1042 = vsub.f32 %v1034, %v1038
        %v1043 = vsub.f32 %v1035, %v1039
        %v1044 = vmax.f32 %v1040, 0.0
        %v1045 = vmax.f32 %v1041, 0.0
        %v1046 = vmax.f32 %v1042, 0.0
        %v1047 = vmax.f32 %v1043, 0.0
        %v1048 = vsub.f32 %v911, %v1028
        %v1049 = vsub.f32 %v913, %v1029
        %v1050 = vsub.f32 %v954, %v1030
        %v1051 = vsub.f32 %v956, %v1031
        %v1052 = vsub.f32 %v915, %v1028
        %v1053 = vsub.f32 %v917, %v1029
        %v1054 = vsub.f32 %v958, %v1030
        %v1055 = vsub.f32 %v960, %v1031
        %v1056 = vadd.f32 %v1044, 1e-05
        %v1057 = vadd.f32 %v1045, 1e-05
        %v1058 = vadd.f32 %v1046, 1e-05
        %v1059 = vadd.f32 %v1047, 1e-05
        %v1060 = vrsqrt.pop %v1056
        %v1061 = vrsqrt.pop %v1057
        %v1062 = vrsqrt.pop %v1058
        %v1063 = vrsqrt.pop %v1059
        %v1064 = vmul.f32 %v1048, %v1060
        %v1065 = vmul.f32 %v1049, %v1061
        %v1066 = vmul.f32 %v1050, %v1062
        %v1067 = vmul.f32 %v1051, %v1063
        %v1068 = vmul.f32 %v1052, %v1060
        %v1069 = vmul.f32 %v1053, %v1061
        %v1070 = vmul.f32 %v1054, %v1062
        %v1071 = vmul.f32 %v1055, %v1063
        %v1073 = vlaneseq
        %v1074 = vshrl.u32 %v1073, 7
        %v1075 = vsub.s32 0, %v1074
        %v1076 = vrot.slane %v962, %v1075
        %v1077 = vlaneseq
        %v1078 = vshrl.u32 %v1077, 7
        %v1079 = vsub.s32 1, %v1078
        %v1080 = vrot.slane %v962, %v1079
        %v1081 = vlaneseq
        %v1082 = vshrl.u32 %v1081, 7
        %v1083 = vsub.s32 2, %v1082
        %v1084 = vrot.slane %v962, %v1083
        %v1085 = vlaneseq
        %v1086 = vshrl.u32 %v1085, 7
        %v1087 = vsub.s32 3, %v1086
        %v1088 = vrot.slane %v962, %v1087
        %v1093 = vmul.f32 %v1064, %v1076
        %v1094 = vmul.f32 %v1065, %v1080
        %v1095 = vmul.f32 %v1066, %v1084
        %v1096 = vmul.f32 %v1067, %v1088
        %v1097 = vmul.f32 %v1068, %v1076
        %v1098 = vmul.f32 %v1069, %v1080
        %v1099 = vmul.f32 %v1070, %v1084
        %v1100 = vmul.f32 %v1071, %v1088
        %v1102 = vlaneseq
        %v1103 = vshrl.u32 %v1102, 7
        %v1104 = vsub.s32 0, %v1103
        %v1105 = vrot.slane %v963, %v1104
        %v1106 = vlaneseq
        %v1107 = vshrl.u32 %v1106, 7
        %v1108 = vsub.s32 1, %v1107
        %v1109 = vrot.slane %v963, %v1108
        %v1110 = vlaneseq
        %v1111 = vshrl.u32 %v1110, 7
        %v1112 = vsub.s32 2, %v1111
        %v1113 = vrot.slane %v963, %v1112
        %v1114 = vlaneseq
        %v1115 = vshrl.u32 %v1114, 7
        %v1116 = vsub.s32 3, %v1115
        %v1117 = vrot.slane %v963, %v1116
        %v1122 = vadd.f32 %v1093, %v1105
        %v1123 = vadd.f32 %v1094, %v1109
        %v1124 = vadd.f32 %v1095, %v1113
        %v1125 = vadd.f32 %v1096, %v1117
        %v1126 = vadd.f32 %v1097, %v1105
        %v1127 = vadd.f32 %v1098, %v1109
        %v1128 = vadd.f32 %v1099, %v1113
        %v1129 = vadd.f32 %v1100, %v1117
        %v1130 = vld [vmem:[%s0] sm:$0xff]
        %v1131 = vld [vmem:[%s0 + $0x8] sm:$0xff]
        %1134 = vrot.lane.b32.xlu0 %v1122, 64
        %v1135 = vpop.permute.xlu0 %1134
        %1136 = vrot.lane.b32.xlu0 %v1126, 64
        %v1137 = vpop.permute.xlu0 %1136
        %v1140 = vpack.c.bf16 %v1122, %v1122
        %v1141 = vpack.c.bf16 %v1126, %v1126
        %v1142 = vpack.c.bf16 %v1135, %v1135
        %v1143 = vpack.c.bf16 %v1137, %v1137
        %1146 = vrot.lane.b32.xlu0 %v1123, 64
        %v1147 = vpop.permute.xlu0 %1146
        %1148 = vrot.lane.b32.xlu0 %v1127, 64
        %v1149 = vpop.permute.xlu0 %1148
        %v1152 = vpack.c.bf16 %v1123, %v1123
        %v1153 = vpack.c.bf16 %v1127, %v1127
        %v1154 = vpack.c.bf16 %v1147, %v1147
        %v1155 = vpack.c.bf16 %v1149, %v1149
        %1158 = vrot.lane.b32.xlu0 %v1124, 64
        %v1159 = vpop.permute.xlu0 %1158
        %1160 = vrot.lane.b32.xlu0 %v1128, 64
        %v1161 = vpop.permute.xlu0 %1160
        %v1164 = vpack.c.bf16 %v1124, %v1124
        %v1165 = vpack.c.bf16 %v1128, %v1128
        %v1166 = vpack.c.bf16 %v1159, %v1159
        %v1167 = vpack.c.bf16 %v1161, %v1161
        %vm1168 = vcmask 523264
        %v1170 = vsel %vm1168, %v1140, 0
        %v1173 = vsel %vm1168, %v1152, 0
        %1175 = vmatprep.subr.bf16.mxu0 0
        %1176 = vmatpush1.bf16.xpose.msra.mxu0 %v1173
        %1177 = vmatprep.subr.bf16.mxu0 0
        %1178 = vmatpush1.bf16.xpose.msra.mxu0 0
        %1179 = vmatprep.subr.bf16.mxu0 0
        %1180 = vmatpush1.bf16.xpose.msra.mxu0 0
        %1181 = vmatprep.subr.bf16.mxu0 0
        %1182 = vmatpush1.bf16.xpose.msra.mxu0 0
        %1183 = vmatprep.subr.bf16.mxu0 0
        %1184 = vmatpush1.bf16.xpose.msra.mxu0 0
        %1185 = vmatprep.subr.bf16.mxu0 0
        %1186 = vmatpush1.bf16.xpose.msra.mxu0 0
        %1187 = vmatprep.subr.bf16.mxu0 0
        %1188 = vmatpush1.bf16.xpose.msra.mxu0 0
        %1189 = vmatprep.subr.bf16.mxu0 0
        %1190 = vmatpush1.bf16.xpose.msra.mxu0 0
        %1191 = vmatprep.subr.bf16.mxu0 0
        %1192 = vmatpush1.bf16.xpose.msra.mxu0 0
        %1193 = vmatprep.subr.bf16.mxu0 0
        %1194 = vmatpush1.bf16.xpose.msra.mxu0 0
        %1195 = vmatprep.subr.bf16.mxu0 0
        %1196 = vmatpush1.bf16.xpose.msra.mxu0 0
        %1197 = vmatprep.subr.bf16.mxu0 0
        %1198 = vmatpush1.bf16.xpose.msra.mxu0 0
        %1199 = vmatprep.subr.bf16.mxu0 0
        %1200 = vmatpush1.bf16.xpose.msra.mxu0 0
        %1201 = vmatprep.subr.bf16.mxu0 0
        %1202 = vmatpush1.bf16.xpose.msra.mxu0 0
        %1203 = vmatprep.subr.bf16.mxu0 0
        %1204 = vmatpush1.bf16.xpose.msra.mxu0 0
        %1205 = vmatprep.subr.bf16.mxu0 0
        %1206 = vmatpush1.bf16.xpose.msra.mxu0 0
        %1207 = vmatprep.mubr.bf16.mxu0 0
        %1208 = vmatmul.mubr.bf16.gmra.mrb[0].mxu0 %v1170
        %v1209 = vpop.f32.mrb[0].mxu0
        %v1210 = vadd.f32 0.0, %v1209
        %v1211 = vpop.f32.mrb[0].mxu0
        %v1212 = vpop.f32.mrb[0].mxu0
        %v1213 = vpop.f32.mrb[0].mxu0
        %1214 = vdwg.mxu0
        %v1216 = vsel %vm1168, %v1141, 0
        %v1219 = vsel %vm1168, %v1153, 0
        %1221 = vmatprep.subr.bf16.mxu0 0
        %1222 = vmatpush1.bf16.xpose.msra.mxu0 %v1219
        %1223 = vmatprep.subr.bf16.mxu0 0
        %1224 = vmatpush1.bf16.xpose.msra.mxu0 0
        %1225 = vmatprep.subr.bf16.mxu0 0
        %1226 = vmatpush1.bf16.xpose.msra.mxu0 0
        %1227 = vmatprep.subr.bf16.mxu0 0
        %1228 = vmatpush1.bf16.xpose.msra.mxu0 0
        %1229 = vmatprep.subr.bf16.mxu0 0
        %1230 = vmatpush1.bf16.xpose.msra.mxu0 0
        %1231 = vmatprep.subr.bf16.mxu0 0
        %1232 = vmatpush1.bf16.xpose.msra.mxu0 0
        %1233 = vmatprep.subr.bf16.mxu0 0
        %1234 = vmatpush1.bf16.xpose.msra.mxu0 0
        %1235 = vmatprep.subr.bf16.mxu0 0
        %1236 = vmatpush1.bf16.xpose.msra.mxu0 0
        %1237 = vmatprep.subr.bf16.mxu0 0
        %1238 = vmatpush1.bf16.xpose.msra.mxu0 0
        %1239 = vmatprep.subr.bf16.mxu0 0
        %1240 = vmatpush1.bf16.xpose.msra.mxu0 0
        %1241 = vmatprep.subr.bf16.mxu0 0
        %1242 = vmatpush1.bf16.xpose.msra.mxu0 0
        %1243 = vmatprep.subr.bf16.mxu0 0
        %1244 = vmatpush1.bf16.xpose.msra.mxu0 0
        %1245 = vmatprep.subr.bf16.mxu0 0
        %1246 = vmatpush1.bf16.xpose.msra.mxu0 0
        %1247 = vmatprep.subr.bf16.mxu0 0
        %1248 = vmatpush1.bf16.xpose.msra.mxu0 0
        %1249 = vmatprep.subr.bf16.mxu0 0
        %1250 = vmatpush1.bf16.xpose.msra.mxu0 0
        %1251 = vmatprep.subr.bf16.mxu0 0
        %1252 = vmatpush1.bf16.xpose.msra.mxu0 0
        %1253 = vmatprep.mubr.bf16.mxu0 0
        %1254 = vmatmul.mubr.bf16.gmra.mrb[0].mxu0 %v1216
        %v1255 = vpop.f32.mrb[0].mxu0
        %v1256 = vadd.f32 0.0, %v1255
        %v1257 = vpop.f32.mrb[0].mxu0
        %v1258 = vpop.f32.mrb[0].mxu0
        %v1259 = vpop.f32.mrb[0].mxu0
        %1260 = vdwg.mxu0
        %v1262 = vsel %vm1168, %v1142, 0
        %v1265 = vsel %vm1168, %v1154, 0
        %1267 = vmatprep.subr.bf16.mxu0 0
        %1268 = vmatpush1.bf16.xpose.msra.mxu0 %v1265
        %1269 = vmatprep.subr.bf16.mxu0 0
        %1270 = vmatpush1.bf16.xpose.msra.mxu0 0
        %1271 = vmatprep.subr.bf16.mxu0 0
        %1272 = vmatpush1.bf16.xpose.msra.mxu0 0
        %1273 = vmatprep.subr.bf16.mxu0 0
        %1274 = vmatpush1.bf16.xpose.msra.mxu0 0
        %1275 = vmatprep.subr.bf16.mxu0 0
        %1276 = vmatpush1.bf16.xpose.msra.mxu0 0
        %1277 = vmatprep.subr.bf16.mxu0 0
        %1278 = vmatpush1.bf16.xpose.msra.mxu0 0
        %1279 = vmatprep.subr.bf16.mxu0 0
        %1280 = vmatpush1.bf16.xpose.msra.mxu0 0
        %1281 = vmatprep.subr.bf16.mxu0 0
        %1282 = vmatpush1.bf16.xpose.msra.mxu0 0
        %1283 = vmatprep.subr.bf16.mxu0 0
        %1284 = vmatpush1.bf16.xpose.msra.mxu0 0
        %1285 = vmatprep.subr.bf16.mxu0 0
        %1286 = vmatpush1.bf16.xpose.msra.mxu0 0
        %1287 = vmatprep.subr.bf16.mxu0 0
        %1288 = vmatpush1.bf16.xpose.msra.mxu0 0
        %1289 = vmatprep.subr.bf16.mxu0 0
        %1290 = vmatpush1.bf16.xpose.msra.mxu0 0
        %1291 = vmatprep.subr.bf16.mxu0 0
        %1292 = vmatpush1.bf16.xpose.msra.mxu0 0
        %1293 = vmatprep.subr.bf16.mxu0 0
        %1294 = vmatpush1.bf16.xpose.msra.mxu0 0
        %1295 = vmatprep.subr.bf16.mxu0 0
        %1296 = vmatpush1.bf16.xpose.msra.mxu0 0
        %1297 = vmatprep.subr.bf16.mxu0 0
        %1298 = vmatpush1.bf16.xpose.msra.mxu0 0
        %1299 = vmatprep.mubr.bf16.mxu0 0
        %1300 = vmatmul.mubr.bf16.gmra.mrb[0].mxu0 %v1262
        %v1301 = vpop.f32.mrb[0].mxu0
        %v1302 = vadd.f32 0.0, %v1301
        %v1303 = vpop.f32.mrb[0].mxu0
        %v1304 = vpop.f32.mrb[0].mxu0
        %v1305 = vpop.f32.mrb[0].mxu0
        %1306 = vdwg.mxu0
        %v1308 = vsel %vm1168, %v1143, 0
        %v1311 = vsel %vm1168, %v1155, 0
        %1313 = vmatprep.subr.bf16.mxu0 0
        %1314 = vmatpush1.bf16.xpose.msra.mxu0 %v1311
        %1315 = vmatprep.subr.bf16.mxu0 0
        %1316 = vmatpush1.bf16.xpose.msra.mxu0 0
        %1317 = vmatprep.subr.bf16.mxu0 0
        %1318 = vmatpush1.bf16.xpose.msra.mxu0 0
        %1319 = vmatprep.subr.bf16.mxu0 0
        %1320 = vmatpush1.bf16.xpose.msra.mxu0 0
        %1321 = vmatprep.subr.bf16.mxu0 0
        %1322 = vmatpush1.bf16.xpose.msra.mxu0 0
        %1323 = vmatprep.subr.bf16.mxu0 0
        %1324 = vmatpush1.bf16.xpose.msra.mxu0 0
        %1325 = vmatprep.subr.bf16.mxu0 0
        %1326 = vmatpush1.bf16.xpose.msra.mxu0 0
        %1327 = vmatprep.subr.bf16.mxu0 0
        %1328 = vmatpush1.bf16.xpose.msra.mxu0 0
        %1329 = vmatprep.subr.bf16.mxu0 0
        %1330 = vmatpush1.bf16.xpose.msra.mxu0 0
        %1331 = vmatprep.subr.bf16.mxu0 0
        %1332 = vmatpush1.bf16.xpose.msra.mxu0 0
        %1333 = vmatprep.subr.bf16.mxu0 0
        %1334 = vmatpush1.bf16.xpose.msra.mxu0 0
        %1335 = vmatprep.subr.bf16.mxu0 0
        %1336 = vmatpush1.bf16.xpose.msra.mxu0 0
        %1337 = vmatprep.subr.bf16.mxu0 0
        %1338 = vmatpush1.bf16.xpose.msra.mxu0 0
        %1339 = vmatprep.subr.bf16.mxu0 0
        %1340 = vmatpush1.bf16.xpose.msra.mxu0 0
        %1341 = vmatprep.subr.bf16.mxu0 0
        %1342 = vmatpush1.bf16.xpose.msra.mxu0 0
        %1343 = vmatprep.subr.bf16.mxu0 0
        %1344 = vmatpush1.bf16.xpose.msra.mxu0 0
        %1345 = vmatprep.mubr.bf16.mxu0 0
        %1346 = vmatmul.mubr.bf16.gmra.mrb[0].mxu0 %v1308
        %v1347 = vpop.f32.mrb[0].mxu0
        %v1348 = vadd.f32 0.0, %v1347
        %v1349 = vpop.f32.mrb[0].mxu0
        %v1350 = vpop.f32.mrb[0].mxu0
        %v1351 = vpop.f32.mrb[0].mxu0
        %1352 = vdwg.mxu0
        %v1353 = vmul.f32 %v1210, %v1130
        %v1354 = vmul.f32 %v1256, %v1131
        %v1355 = vmul.f32 %v1302, %v1130
        %v1356 = vmul.f32 %v1348, %v1131
        %vm1357 = vcmask 64512
        %v1358 = vsel %vm1357, %v1353, -inf
        %1359 = vmax.xlane.f32.xlu0 %v1358
        %v1360 = vpop.xlane.xlu0 %1359
        %v1361 = vsel %vm1357, %v1354, -inf
        %1362 = vmax.xlane.f32.xlu0 %v1361
        %v1363 = vpop.xlane.xlu0 %1362
        %v1364 = vsel %vm1357, %v1355, -inf
        %1365 = vmax.xlane.f32.xlu0 %v1364
        %v1366 = vpop.xlane.xlu0 %1365
        %v1367 = vsel %vm1357, %v1356, -inf
        %1368 = vmax.xlane.f32.xlu0 %v1367
        %v1369 = vpop.xlane.xlu0 %1368
        %v1370 = vsub.f32 %v1353, %v1360
        %v1371 = vsub.f32 %v1354, %v1363
        %v1372 = vsub.f32 %v1355, %v1366
        %v1373 = vsub.f32 %v1356, %v1369
        %v1374 = vmul.f32 %v1370, 1.442695
        %v1375 = vpow.pop %v1374
        %v1376 = vmul.f32 %v1371, 1.442695
        %v1377 = vpow.pop %v1376
        %v1378 = vmul.f32 %v1372, 1.442695
        %v1379 = vpow.pop %v1378
        %v1380 = vmul.f32 %v1373, 1.442695
        %v1381 = vpow.pop %v1380
        %v1382 = vsel %vm1357, %v1375, 0.0
        %1383 = vadd.xlane.f32.xlu0 %v1382
        %v1384 = vpop.xlane.xlu0 %1383
        %v1385 = vsel %vm1357, %v1377, 0.0
        %1386 = vadd.xlane.f32.xlu0 %v1385
        %v1387 = vpop.xlane.xlu0 %1386
        %v1388 = vsel %vm1357, %v1379, 0.0
        %1389 = vadd.xlane.f32.xlu0 %v1388
        %v1390 = vpop.xlane.xlu0 %1389
        %v1391 = vsel %vm1357, %v1381, 0.0
        %1392 = vadd.xlane.f32.xlu0 %v1391
        %v1393 = vpop.xlane.xlu0 %1392
        %v1394 = vrcp.pop %v1384
        %v1395 = vrcp.pop %v1387
        %v1396 = vrcp.pop %v1390
        %v1397 = vrcp.pop %v1393
        %v1398 = vmul.f32 %v1375, %v1394
        %v1399 = vmul.f32 %v1377, %v1395
        %v1400 = vmul.f32 %v1379, %v1396
        %v1401 = vmul.f32 %v1381, %v1397
        %v1402 = vpack.c.bf16 %v1398, %v1398
        %v1403 = vpack.c.bf16 %v1399, %v1399
        %v1404 = vpack.c.bf16 %v1400, %v1400
        %v1405 = vpack.c.bf16 %v1401, %v1401
        %v1407 = vsel %vm1357, %v1402, 0
        %vm1409 = vcmask 1043456
        %v1411 = vsel %vm1409, %v1164, 0
        %1413 = vmatprep.subr.bf16.mxu0 0
        %1414 = vmatpush1.bf16.msra.mxu0 %v1411
        %1415 = vmatprep.subr.bf16.mxu0 0
        %1416 = vmatpush1.bf16.msra.mxu0 0
        %1417 = vmatprep.subr.bf16.mxu0 0
        %1418 = vmatpush1.bf16.msra.mxu0 0
        %1419 = vmatprep.subr.bf16.mxu0 0
        %1420 = vmatpush1.bf16.msra.mxu0 0
        %1421 = vmatprep.subr.bf16.mxu0 0
        %1422 = vmatpush1.bf16.msra.mxu0 0
        %1423 = vmatprep.subr.bf16.mxu0 0
        %1424 = vmatpush1.bf16.msra.mxu0 0
        %1425 = vmatprep.subr.bf16.mxu0 0
        %1426 = vmatpush1.bf16.msra.mxu0 0
        %1427 = vmatprep.subr.bf16.mxu0 0
        %1428 = vmatpush1.bf16.msra.mxu0 0
        %1429 = vmatprep.subr.bf16.mxu0 0
        %1430 = vmatpush1.bf16.msra.mxu0 0
        %1431 = vmatprep.subr.bf16.mxu0 0
        %1432 = vmatpush1.bf16.msra.mxu0 0
        %1433 = vmatprep.subr.bf16.mxu0 0
        %1434 = vmatpush1.bf16.msra.mxu0 0
        %1435 = vmatprep.subr.bf16.mxu0 0
        %1436 = vmatpush1.bf16.msra.mxu0 0
        %1437 = vmatprep.subr.bf16.mxu0 0
        %1438 = vmatpush1.bf16.msra.mxu0 0
        %1439 = vmatprep.subr.bf16.mxu0 0
        %1440 = vmatpush1.bf16.msra.mxu0 0
        %1441 = vmatprep.subr.bf16.mxu0 0
        %1442 = vmatpush1.bf16.msra.mxu0 0
        %1443 = vmatprep.subr.bf16.mxu0 0
        %1444 = vmatpush1.bf16.msra.mxu0 0
        %1445 = vmatprep.mubr.bf16.mxu0 0
        %1446 = vmatmul.mubr.bf16.gmra.mrb[0].mxu0 %v1407
        %v1447 = vpop.f32.mrb[0].mxu0
        %v1448 = vadd.f32 0.0, %v1447
        %v1449 = vpop.f32.mrb[0].mxu0
        %v1450 = vpop.f32.mrb[0].mxu0
        %v1451 = vpop.f32.mrb[0].mxu0
        %1452 = vdwg.mxu0
        %v1454 = vsel %vm1357, %v1403, 0
        %v1457 = vsel %vm1409, %v1165, 0
        %1459 = vmatprep.subr.bf16.mxu0 0
        %1460 = vmatpush1.bf16.msra.mxu0 %v1457
        %1461 = vmatprep.subr.bf16.mxu0 0
        %1462 = vmatpush1.bf16.msra.mxu0 0
        %1463 = vmatprep.subr.bf16.mxu0 0
        %1464 = vmatpush1.bf16.msra.mxu0 0
        %1465 = vmatprep.subr.bf16.mxu0 0
        %1466 = vmatpush1.bf16.msra.mxu0 0
        %1467 = vmatprep.subr.bf16.mxu0 0
        %1468 = vmatpush1.bf16.msra.mxu0 0
        %1469 = vmatprep.subr.bf16.mxu0 0
        %1470 = vmatpush1.bf16.msra.mxu0 0
        %1471 = vmatprep.subr.bf16.mxu0 0
        %1472 = vmatpush1.bf16.msra.mxu0 0
        %1473 = vmatprep.subr.bf16.mxu0 0
        %1474 = vmatpush1.bf16.msra.mxu0 0
        %1475 = vmatprep.subr.bf16.mxu0 0
        %1476 = vmatpush1.bf16.msra.mxu0 0
        %1477 = vmatprep.subr.bf16.mxu0 0
        %1478 = vmatpush1.bf16.msra.mxu0 0
        %1479 = vmatprep.subr.bf16.mxu0 0
        %1480 = vmatpush1.bf16.msra.mxu0 0
        %1481 = vmatprep.subr.bf16.mxu0 0
        %1482 = vmatpush1.bf16.msra.mxu0 0
        %1483 = vmatprep.subr.bf16.mxu0 0
        %1484 = vmatpush1.bf16.msra.mxu0 0
        %1485 = vmatprep.subr.bf16.mxu0 0
        %1486 = vmatpush1.bf16.msra.mxu0 0
        %1487 = vmatprep.subr.bf16.mxu0 0
        %1488 = vmatpush1.bf16.msra.mxu0 0
        %1489 = vmatprep.subr.bf16.mxu0 0
        %1490 = vmatpush1.bf16.msra.mxu0 0
        %1491 = vmatprep.mubr.bf16.mxu0 0
        %1492 = vmatmul.mubr.bf16.gmra.mrb[0].mxu0 %v1454
        %v1493 = vpop.f32.mrb[0].mxu0
        %v1494 = vadd.f32 0.0, %v1493
        %v1495 = vpop.f32.mrb[0].mxu0
        %v1496 = vpop.f32.mrb[0].mxu0
        %v1497 = vpop.f32.mrb[0].mxu0
        %1498 = vdwg.mxu0
        %v1500 = vsel %vm1357, %v1404, 0
        %v1503 = vsel %vm1409, %v1166, 0
        %1505 = vmatprep.subr.bf16.mxu0 0
        %1506 = vmatpush1.bf16.msra.mxu0 %v1503
        %1507 = vmatprep.subr.bf16.mxu0 0
        %1508 = vmatpush1.bf16.msra.mxu0 0
        %1509 = vmatprep.subr.bf16.mxu0 0
        %1510 = vmatpush1.bf16.msra.mxu0 0
        %1511 = vmatprep.subr.bf16.mxu0 0
        %1512 = vmatpush1.bf16.msra.mxu0 0
        %1513 = vmatprep.subr.bf16.mxu0 0
        %1514 = vmatpush1.bf16.msra.mxu0 0
        %1515 = vmatprep.subr.bf16.mxu0 0
        %1516 = vmatpush1.bf16.msra.mxu0 0
        %1517 = vmatprep.subr.bf16.mxu0 0
        %1518 = vmatpush1.bf16.msra.mxu0 0
        %1519 = vmatprep.subr.bf16.mxu0 0
        %1520 = vmatpush1.bf16.msra.mxu0 0
        %1521 = vmatprep.subr.bf16.mxu0 0
        %1522 = vmatpush1.bf16.msra.mxu0 0
        %1523 = vmatprep.subr.bf16.mxu0 0
        %1524 = vmatpush1.bf16.msra.mxu0 0
        %1525 = vmatprep.subr.bf16.mxu0 0
        %1526 = vmatpush1.bf16.msra.mxu0 0
        %1527 = vmatprep.subr.bf16.mxu0 0
        %1528 = vmatpush1.bf16.msra.mxu0 0
        %1529 = vmatprep.subr.bf16.mxu0 0
        %1530 = vmatpush1.bf16.msra.mxu0 0
        %1531 = vmatprep.subr.bf16.mxu0 0
        %1532 = vmatpush1.bf16.msra.mxu0 0
        %1533 = vmatprep.subr.bf16.mxu0 0
        %1534 = vmatpush1.bf16.msra.mxu0 0
        %1535 = vmatprep.subr.bf16.mxu0 0
        %1536 = vmatpush1.bf16.msra.mxu0 0
        %1537 = vmatprep.mubr.bf16.mxu0 0
        %1538 = vmatmul.mubr.bf16.gmra.mrb[0].mxu0 %v1500
        %v1539 = vpop.f32.mrb[0].mxu0
        %v1540 = vadd.f32 0.0, %v1539
        %v1541 = vpop.f32.mrb[0].mxu0
        %v1542 = vpop.f32.mrb[0].mxu0
        %v1543 = vpop.f32.mrb[0].mxu0
        %1544 = vdwg.mxu0
        %v1546 = vsel %vm1357, %v1405, 0
        %v1549 = vsel %vm1409, %v1167, 0
        %1551 = vmatprep.subr.bf16.mxu0 0
        %1552 = vmatpush1.bf16.msra.mxu0 %v1549
        %1553 = vmatprep.subr.bf16.mxu0 0
        %1554 = vmatpush1.bf16.msra.mxu0 0
        %1555 = vmatprep.subr.bf16.mxu0 0
        %1556 = vmatpush1.bf16.msra.mxu0 0
        %1557 = vmatprep.subr.bf16.mxu0 0
        %1558 = vmatpush1.bf16.msra.mxu0 0
        %1559 = vmatprep.subr.bf16.mxu0 0
        %1560 = vmatpush1.bf16.msra.mxu0 0
        %1561 = vmatprep.subr.bf16.mxu0 0
        %1562 = vmatpush1.bf16.msra.mxu0 0
        %1563 = vmatprep.subr.bf16.mxu0 0
        %1564 = vmatpush1.bf16.msra.mxu0 0
        %1565 = vmatprep.subr.bf16.mxu0 0
        %1566 = vmatpush1.bf16.msra.mxu0 0
        %1567 = vmatprep.subr.bf16.mxu0 0
        %1568 = vmatpush1.bf16.msra.mxu0 0
        %1569 = vmatprep.subr.bf16.mxu0 0
        %1570 = vmatpush1.bf16.msra.mxu0 0
        %1571 = vmatprep.subr.bf16.mxu0 0
        %1572 = vmatpush1.bf16.msra.mxu0 0
        %1573 = vmatprep.subr.bf16.mxu0 0
        %1574 = vmatpush1.bf16.msra.mxu0 0
        %1575 = vmatprep.subr.bf16.mxu0 0
        %1576 = vmatpush1.bf16.msra.mxu0 0
        %1577 = vmatprep.subr.bf16.mxu0 0
        %1578 = vmatpush1.bf16.msra.mxu0 0
        %1579 = vmatprep.subr.bf16.mxu0 0
        %1580 = vmatpush1.bf16.msra.mxu0 0
        %1581 = vmatprep.subr.bf16.mxu0 0
        %1582 = vmatpush1.bf16.msra.mxu0 0
        %1583 = vmatprep.mubr.bf16.mxu0 0
        %1584 = vmatmul.mubr.bf16.gmra.mrb[0].mxu0 %v1546
        %v1585 = vpop.f32.mrb[0].mxu0
        %v1586 = vadd.f32 0.0, %v1585
        %v1587 = vpop.f32.mrb[0].mxu0
        %v1588 = vpop.f32.mrb[0].mxu0
        %v1589 = vpop.f32.mrb[0].mxu0
        %1590 = vdwg.mxu0
        %1593 = vrot.lane.b32.xlu0 %v1540, 64
        %v1594 = vpop.permute.xlu0 %1593
        %1595 = vrot.lane.b32.xlu0 %v1586, 64
        %v1596 = vpop.permute.xlu0 %1595
        %v1599 = vsel %vm1168, %v1448, %v1594
        %v1600 = vsel %vm1168, %v1494, %v1596
        %v1601 = vld [vmem:[%s646] sm:$0x1]
        %v1602 = vld [vmem:[%s649] sm:$0x1]
        %v1603 = vadd.f32 %v1599, %v659
        %v1604 = vadd.f32 %v1600, %v660
        %1605 = vadd.xlane.f32.xlu0 %v1603
        %v1606 = vpop.xlane.xlu0 %1605
        %1607 = vadd.xlane.f32.xlu0 %v1604
        %v1608 = vpop.xlane.xlu0 %1607
        %v1609 = vmul.f32 %v1603, %v1603
        %v1610 = vmul.f32 %v1604, %v1604
        %1611 = vadd.xlane.f32.xlu0 %v1609
        %v1612 = vpop.xlane.xlu0 %1611
        %1613 = vadd.xlane.f32.xlu0 %v1610
        %v1614 = vpop.xlane.xlu0 %1613
        %v1615 = vmul.f32 %v1606, 0.03125
        %v1616 = vmul.f32 %v1608, 0.03125
        %v1617 = vmul.f32 %v1612, 0.03125
        %v1618 = vmul.f32 %v1614, 0.03125
        %v1619 = vmul.f32 %v1615, %v1615
        %v1620 = vmul.f32 %v1616, %v1616
        %v1621 = vsub.f32 %v1617, %v1619
        %v1622 = vsub.f32 %v1618, %v1620
        %v1623 = vmax.f32 %v1621, 0.0
        %v1624 = vmax.f32 %v1622, 0.0
        %v1625 = vsub.f32 %v1603, %v1615
        %v1626 = vsub.f32 %v1604, %v1616
        %v1627 = vadd.f32 %v1623, 1e-05
        %v1628 = vadd.f32 %v1624, 1e-05
        %v1629 = vrsqrt.pop %v1627
        %v1630 = vrsqrt.pop %v1628
        %v1631 = vmul.f32 %v1625, %v1629
        %v1632 = vmul.f32 %v1626, %v1630
        %v1634 = vlaneseq
        %v1635 = vshrl.u32 %v1634, 7
        %v1636 = vsub.s32 0, %v1635
        %v1637 = vrot.slane %v1601, %v1636
        %v1639 = vmul.f32 %v1631, %v1637
        %v1640 = vmul.f32 %v1632, %v1637
        %v1642 = vlaneseq
        %v1643 = vshrl.u32 %v1642, 7
        %v1644 = vsub.s32 0, %v1643
        %v1645 = vrot.slane %v1602, %v1644
        %v1647 = vadd.f32 %v1639, %v1645
        %v1648 = vadd.f32 %v1640, %v1645
        %v1649 = vld [vmem:[%s537] sm:$0xf]
        %v1650 = vld [vmem:[%s537 + $0x4] sm:$0xf]
        %v1651 = vld [vmem:[%s537 + $0x8] sm:$0xf]
        %v1652 = vld [vmem:[%s537 + $0xc] sm:$0xf]
        %v1653 = vld [vmem:[%s537 + $0x10] sm:$0xf]
        %v1654 = vld [vmem:[%s537 + $0x14] sm:$0xf]
        %v1655 = vld [vmem:[%s537 + $0x18] sm:$0xf]
        %v1656 = vld [vmem:[%s537 + $0x1c] sm:$0xf]
        %v1657 = vld [vmem:[%s537 + $0x20] sm:$0xf]
        %v1658 = vld [vmem:[%s537 + $0x24] sm:$0xf]
        %v1659 = vld [vmem:[%s537 + $0x28] sm:$0xf]
        %v1660 = vld [vmem:[%s537 + $0x2c] sm:$0xf]
        %v1661 = vld [vmem:[%s537 + $0x30] sm:$0xf]
        %v1662 = vld [vmem:[%s537 + $0x34] sm:$0xf]
        %v1663 = vld [vmem:[%s537 + $0x38] sm:$0xf]
        %v1664 = vld [vmem:[%s537 + $0x3c] sm:$0xf]
        %v1665 = vld [vmem:[%s545] sm:$0x1]
        %v1666 = vpack.c.bf16 %v1648, %v1647
        %v1668 = vlaneseq
        %v1669 = vshrl.u32 %v1668, 7
        %v1670 = vsub.s32 0, %v1669
        %v1671 = vrot.slane %v1665, %v1670
        %v1689 = vunpack.c.l.b16 %v1649
        %v1690 = vunpack.c.l.b16 %v1650
        %v1691 = vunpack.c.l.b16 %v1651
        %v1692 = vunpack.c.l.b16 %v1652
        %v1693 = vunpack.c.l.b16 %v1653
        %v1694 = vunpack.c.l.b16 %v1654
        %v1695 = vunpack.c.l.b16 %v1655
        %v1696 = vunpack.c.l.b16 %v1656
        %v1697 = vunpack.c.l.b16 %v1657
        %v1698 = vunpack.c.l.b16 %v1658
        %v1699 = vunpack.c.l.b16 %v1659
        %v1700 = vunpack.c.l.b16 %v1660
        %v1701 = vunpack.c.l.b16 %v1661
        %v1702 = vunpack.c.l.b16 %v1662
        %v1703 = vunpack.c.l.b16 %v1663
        %v1704 = vunpack.c.l.b16 %v1664
        %v1705 = vpack.c.b16 %v1690, %v1689
        %v1706 = vpack.c.b16 %v1692, %v1691
        %v1707 = vpack.c.b16 %v1694, %v1693
        %v1708 = vpack.c.b16 %v1696, %v1695
        %v1709 = vpack.c.b16 %v1698, %v1697
        %v1710 = vpack.c.b16 %v1700, %v1699
        %v1711 = vpack.c.b16 %v1702, %v1701
        %v1712 = vpack.c.b16 %v1704, %v1703
        %1721 = vmatprep.subr.bf16.mxu0 0
        %1722 = vmatpush1.bf16.msra.mxu0 %v1705
        %1723 = vmatprep.subr.bf16.mxu0 0
        %1724 = vmatpush1.bf16.msra.mxu0 %v1706
        %1725 = vmatprep.subr.bf16.mxu0 0
        %1726 = vmatpush1.bf16.msra.mxu0 %v1707
        %1727 = vmatprep.subr.bf16.mxu0 0
        %1728 = vmatpush1.bf16.msra.mxu0 %v1708
        %1729 = vmatprep.subr.bf16.mxu0 0
        %1730 = vmatpush1.bf16.msra.mxu0 %v1709
        %1731 = vmatprep.subr.bf16.mxu0 0
        %1732 = vmatpush1.bf16.msra.mxu0 %v1710
        %1733 = vmatprep.subr.bf16.mxu0 0
        %1734 = vmatpush1.bf16.msra.mxu0 %v1711
        %1735 = vmatprep.subr.bf16.mxu0 0
        %1736 = vmatpush1.bf16.msra.mxu0 %v1712
        %1737 = vmatprep.subr.bf16.mxu0 0
        %1738 = vmatpush1.bf16.msra.mxu0 0
        %1739 = vmatprep.subr.bf16.mxu0 0
        %1740 = vmatpush1.bf16.msra.mxu0 0
        %1741 = vmatprep.subr.bf16.mxu0 0
        %1742 = vmatpush1.bf16.msra.mxu0 0
        %1743 = vmatprep.subr.bf16.mxu0 0
        %1744 = vmatpush1.bf16.msra.mxu0 0
        %1745 = vmatprep.subr.bf16.mxu0 0
        %1746 = vmatpush1.bf16.msra.mxu0 0
        %1747 = vmatprep.subr.bf16.mxu0 0
        %1748 = vmatpush1.bf16.msra.mxu0 0
        %1749 = vmatprep.subr.bf16.mxu0 0
        %1750 = vmatpush1.bf16.msra.mxu0 0
        %1751 = vmatprep.subr.bf16.mxu0 0
        %1752 = vmatpush1.bf16.msra.mxu0 0
        %1753 = vmatprep.mubr.bf16.mxu0 0
        %1754 = vmatmul.mubr.bf16.gmra.mrb[0].mxu0 %v1666
        %v1755 = vpop.f32.mrb[0].mxu0
        %v1756 = vadd.f32 %v1671, %v1755
        %v1757 = vpop.f32.mrb[0].mxu0
        %v1758 = vpop.f32.mrb[0].mxu0
        %v1759 = vadd.f32 %v1671, %v1758
        %v1760 = vpop.f32.mrb[0].mxu0
        %1761 = vdwg.mxu0
        %v1762 = vld [vmem:[%s553] sm:$0x1]
        %v1763 = vld [vmem:[%s561] sm:$0x1]
        %v1764 = vadd.f32 %v1756, %v1759
        %v1765 = vrot.slane %v1764, 4
        %v1766 = vadd.f32 %v1764, %v1765
        %v1767 = vrot.slane %v1766, 2
        %v1768 = vadd.f32 %v1766, %v1767
        %v1769 = vrot.slane %v1768, 1
        %v1770 = vadd.f32 %v1768, %v1769
        %v1771 = vmul.f32 %v1756, %v1756
        %v1772 = vmul.f32 %v1759, %v1759
        %v1773 = vadd.f32 %v1771, %v1772
        %v1774 = vrot.slane %v1773, 4
        %v1775 = vadd.f32 %v1773, %v1774
        %v1776 = vrot.slane %v1775, 2
        %v1777 = vadd.f32 %v1775, %v1776
        %v1778 = vrot.slane %v1777, 1
        %v1779 = vadd.f32 %v1777, %v1778
        %v1780 = vmul.f32 %v1770, 0.0625
        %v1781 = vmul.f32 %v1779, 0.0625
        %v1782 = vmul.f32 %v1780, %v1780
        %v1783 = vsub.f32 %v1781, %v1782
        %v1784 = vmax.f32 %v1783, 0.0
        %v1785 = vsub.f32 %v1756, %v1780
        %v1786 = vsub.f32 %v1759, %v1780
        %v1787 = vadd.f32 %v1784, 1e-05
        %v1788 = vrsqrt.pop %v1787
        %v1789 = vmul.f32 %v1785, %v1788
        %v1790 = vmul.f32 %v1786, %v1788
        %v1792 = vlaneseq
        %v1793 = vshrl.u32 %v1792, 7
        %v1794 = vsub.s32 0, %v1793
        %v1795 = vrot.slane %v1762, %v1794
        %v1797 = vmul.f32 %v1789, %v1795
        %v1798 = vmul.f32 %v1790, %v1795
        %v1800 = vlaneseq
        %v1801 = vshrl.u32 %v1800, 7
        %v1802 = vsub.s32 0, %v1801
        %v1803 = vrot.slane %v1763, %v1802
        %v1805 = vadd.f32 %v1797, %v1803
        %v1806 = vadd.f32 %v1798, %v1803
        %v1807 = vadd.f32 %v1647, %v1805
        %v1808 = vadd.f32 %v1648, %v1806
        %1809 = vadd.xlane.f32.xlu0 %v1807
        %v1810 = vpop.xlane.xlu0 %1809
        %1811 = vadd.xlane.f32.xlu0 %v1808
        %v1812 = vpop.xlane.xlu0 %1811
        %v1813 = vmul.f32 %v1807, %v1807
        %v1814 = vmul.f32 %v1808, %v1808
        %1815 = vadd.xlane.f32.xlu0 %v1813
        %v1816 = vpop.xlane.xlu0 %1815
        %1817 = vadd.xlane.f32.xlu0 %v1814
        %v1818 = vpop.xlane.xlu0 %1817
        %v1819 = vmul.f32 %v1810, 0.03125
        %v1820 = vmul.f32 %v1812, 0.03125
        %v1821 = vmul.f32 %v1816, 0.03125
        %v1822 = vmul.f32 %v1818, 0.03125
        %v1823 = vmul.f32 %v1819, %v1819
        %v1824 = vmul.f32 %v1820, %v1820
        %v1825 = vsub.f32 %v1821, %v1823
        %v1826 = vsub.f32 %v1822, %v1824
        %v1827 = vmax.f32 %v1825, 0.0
        %v1828 = vmax.f32 %v1826, 0.0
        %v1829 = vsub.f32 %v1807, %v1819
        %v1830 = vsub.f32 %v1808, %v1820
        %v1831 = vadd.f32 %v1827, 1e-05
        %v1832 = vadd.f32 %v1828, 1e-05
        %v1833 = vrsqrt.pop %v1831
        %v1834 = vrsqrt.pop %v1832
        %v1835 = vmul.f32 %v1829, %v1833
        %v1836 = vmul.f32 %v1830, %v1834
        %v1837 = vmul.f32 %v1835, %v1637
        %v1838 = vmul.f32 %v1836, %v1637
        %v1839 = vadd.f32 %v1837, %v1645
        %v1840 = vadd.f32 %v1838, %v1645
        %v1841 = vadd.f32 %v1839, %v1125
        %v1842 = vadd.f32 %v1840, %v1129
        %1843 = vst [vmem:[#allocation13] sm:$0xff] %v1841
        %1844 = vst [vmem:[#allocation13 + $0x8] sm:$0xff] %v1842
        // Predicated region
        $region97: #{tpu_custom_call.1} parent=67 // pred_check
          %p1845 = pneg %p349
        $region98: #{tpu_custom_call.1} parent=67 // pred_check_branch
          %1847 = sbr.rel (%p1845) target = $region100
        $region99: #{tpu_custom_call.1} parent=67 // pred_region
          %s1849 = ssub.s32 256, 256
          %1850 = vsyncadd [#allocation4], %s1849
          %s1851 = sshll.u32 [#allocation13], 4
          %s1852 = int_to_ptr.vmem [resolvable:$true] %s1851
          %1857 = dma.vmem_to_hbm [thread:$0]  %s1852, 256, %s12, [#allocation4], 128, 128, 8
        $region100: #{tpu_custom_call.1} parent=67 // pred_fallthru
          _
        // Predicated region
        $region101: #{tpu_custom_call.1} parent=67 // pred_check
          %p1858 = pneg %p349
        $region102: #{tpu_custom_call.1} parent=67 // pred_check_branch
          %1860 = sbr.rel (%p1858) target = $region104
        $region103: #{tpu_custom_call.1} parent=67 // pred_region
          %1861 = dma.done [#allocation4], 256
        $region104: #{tpu_custom_call.1} parent=67 // pred_fallthru
          _
      $region68: #{tpu_custom_call.1} parent=5 // pred_fallthru
        _
      %p1862 = scmp.le.s32.totalorder 2, %s29
      // Predicated region
      $region105: #{tpu_custom_call.1} parent=5 // pred_check
        %p1863 = pneg %p1862
      $region106: #{tpu_custom_call.1} parent=5 // pred_check_branch
        %1865 = sbr.rel (%p1863) target = $region108
      $region107: #{tpu_custom_call.1} parent=5 // pred_region
        %s1866 = ssub.s32 %s29, 2
      $region108: #{tpu_custom_call.1} parent=5 // pred_fallthru
        _
    $region6: #{tpu_custom_call.1} parent=1 // loop_footer
      %s33 = sadd.s32 1, %s29
    $region7: #{tpu_custom_call.1} parent=1 // loop_footer_branch
      %28 = sbr.rel target = $region3
    $region8: #{tpu_custom_call.1} parent=1 // loop_exit
      _
    %1867 = vsyncpa [#allocation3], 1
    %s1868 = scalar_lea.sflag [#allocation3], 1
    %1869 = vsyncpa %s1868, 1
    %1870 = vsyncpa [#allocation6], 1
    %s1871 = scalar_lea.sflag [#allocation6], 1
    %1872 = vsyncpa %s1871, 1
    %1873 = vsyncpa [#allocation9], 1
    %s1874 = scalar_lea.sflag [#allocation9], 1
    %1875 = vsyncpa %s1874, 1
    %1876 = vsyncpa [#allocation12], 1
    %s1877 = scalar_lea.sflag [#allocation12], 1
    %1878 = vsyncpa %s1877, 1
    %1879 = vsyncpa [#allocation4], 1
    %s1880 = scalar_lea.sflag [#allocation4], 1
    %1881 = vsyncpa %s1880, 1

</llo_original>
